<compile_context>
chip_gen: v7x
topology: tpu7x:2x2x1
jax: 0.10.0
libtpu: 0.0.40
codegen_flags: <defaults>
</compile_context>

<pallas_src>
import functools
import math

import jax
import jax.numpy as jnp
from jax import lax
from jax.experimental import pallas as pl
from jax.experimental.pallas import tpu as pltpu


def _layer_norm(x, w, b, eps):
    # PyTorch LayerNorm semantics: biased variance, eps inside the sqrt.
    mu = jnp.mean(x, axis=-1, keepdims=True)
    var = jnp.mean((x - mu) ** 2, axis=-1, keepdims=True)
    return (x - mu) * lax.rsqrt(var + eps) * w + b


def _block_kernel(x_ref,
                  wqkv_ref, bqkv_ref,
                  qn_w_ref, qn_b_ref, kn_w_ref, kn_b_ref,
                  eh_ref, ln_w_ref, ln_b_ref,
                  w1_ref, b1_ref, w2_ref, b2_ref,
                  o_ref, *, num_heads, head_dim, eps, matmul_dtype):
    H, D = num_heads, head_dim
    f32 = jnp.float32
    md = matmul_dtype

    xb = x_ref[...].astype(f32)                         # (N, C), one batch element
    N, C = xb.shape

    # ---- fused grouped q/k/v projection ------------------------------------
    # VMEM-resident broadcast of x across heads (no HBM replication), then a
    # single batched matmul (H, N, C) @ (H, C, 3D) with f32 accumulation.
    xh = jnp.broadcast_to(xb.astype(md), (H, N, C))
    qkv = jnp.einsum("hnc,hcd->hnd", xh, wqkv_ref[...],
                     preferred_element_type=f32) + bqkv_ref[...]   # (H, N, 3D)

    q = qkv[:, :, 0:D]
    k = qkv[:, :, D:2 * D]
    v = qkv[:, :, 2 * D:3 * D]

    # ---- per-head q/k LayerNorm (1/sqrt(head_dim) pre-folded into q affine) --
    q = _layer_norm(q, qn_w_ref[...], qn_b_ref[...], eps)
    k = _layer_norm(k, kn_w_ref[...], kn_b_ref[...], eps)

    # ---- scaled-dot-product attention, batched over heads --------------------
    s = jnp.einsum("hqd,hkd->hqk", q.astype(md), k.astype(md),
                   preferred_element_type=f32)                     # (H, N, N)
    s = s - jnp.max(s, axis=-1, keepdims=True)
    p = jnp.exp(s)
    p = p * pl.reciprocal(jnp.sum(p, axis=-1, keepdims=True), approx=True)
    o = jnp.einsum("hqk,hkd->hqd", p.astype(md), v.astype(md),
                   preferred_element_type=f32)                     # (H, N, D)

    # ---- head concat to (N, C): one batched 0/1-selector matmul + sum over h --
    attn = jnp.sum(
        jnp.einsum("hnd,hdc->hnc", o.astype(md), eh_ref[...],
                   preferred_element_type=f32),
        axis=0)                                                    # (N, C)

    # ---- residual 1 ----
    x1 = xb + attn

    # ---- MLP on LayerNorm(x1) ----
    xl = _layer_norm(x1, ln_w_ref[...], ln_b_ref[...], eps)
    h1 = jnp.dot(xl.astype(md), w1_ref[...],
                 preferred_element_type=f32) + b1_ref[...]
    # exact (erf-based) GELU, matching nn.GELU() default
    g = 0.5 * h1 * (1.0 + lax.erf(h1 * (1.0 / math.sqrt(2.0))))
    y = jnp.dot(g.astype(md), w2_ref[...],
                preferred_element_type=f32) + b2_ref[...]

    # ---- residual 2 ----
    o_ref[...] = (x1 + y).astype(o_ref.dtype)


def prepare_params(raw, *, num_heads, matmul_dtype=jnp.bfloat16):
    """One-time re-layout of PyTorch-style parameters (Linear weight = (out, in))."""
    f32 = jnp.float32
    md = matmul_dtype
    qkv_w = raw["qkv_w"]                      # (3C, C)
    C = qkv_w.shape[1]
    H = num_heads
    D = C // H
    scale = D ** (-0.5)

    w_t = qkv_w.T                             # (C, 3C), so y = x @ w_t + b
    # per-head weights, fused along the output dim: (H, C, 3D) = [q_h | k_h | v_h]
    wq = jnp.transpose(w_t[:, 0:C].reshape(C, H, D), (1, 0, 2))
    wk = jnp.transpose(w_t[:, C:2 * C].reshape(C, H, D), (1, 0, 2))
    wv = jnp.transpose(w_t[:, 2 * C:3 * C].reshape(C, H, D), (1, 0, 2))
    wqkv_h = jnp.concatenate([wq, wk, wv], axis=-1)            # (H, C, 3D)

    b = raw["qkv_b"]
    bq = b[0:C].reshape(H, D)
    bk = b[C:2 * C].reshape(H, D)
    bv = b[2 * C:3 * C].reshape(H, D)
    bqkv_h = jnp.concatenate([bq, bk, bv], axis=-1).reshape(H, 1, 3 * D)

    return {
        "wqkv_h": wqkv_h.astype(md),
        "bqkv_h": bqkv_h.astype(f32),
        # fold the attention scale into the q-norm affine params
        "qn_w": (raw["qn_w"] * scale).reshape(1, 1, D).astype(f32),
        "qn_b": (raw["qn_b"] * scale).reshape(1, 1, D).astype(f32),
        "kn_w": raw["kn_w"].reshape(1, 1, D).astype(f32),
        "kn_b": raw["kn_b"].reshape(1, 1, D).astype(f32),
        # head-placement selectors: eh[h, d, h*D + d] = 1 (exact in bf16)
        "eh": jnp.eye(C, dtype=f32).reshape(H, D, C).astype(md),
        "ln_w": raw["ln_w"].reshape(1, C).astype(f32),
        "ln_b": raw["ln_b"].reshape(1, C).astype(f32),
        "w1": raw["fc1_w"].T.astype(md),
        "b1": raw["fc1_b"].reshape(1, -1).astype(f32),
        "w2": raw["fc2_w"].T.astype(md),
        "b2": raw["fc2_b"].reshape(1, -1).astype(f32),
    }


def block_forward(x, params, *, num_heads):
    B, N, C = x.shape
    H = num_heads
    D = C // H
    M = B * N
    md = params["w1"].dtype                   # matmul operand dtype (bf16 or f32)

    x2d = x.reshape(M, C).astype(jnp.float32)

    kernel = functools.partial(_block_kernel, num_heads=H, head_dim=D,
                               eps=1e-5, matmul_dtype=md)

    def full_spec(a):
        # whole array resident, constant index_map -> DMA'd once across the grid
        return pl.BlockSpec(a.shape, lambda b, _nd=a.ndim: (0,) * _nd)

    out2d = pl.pallas_call(
        kernel,
        out_shape=jax.ShapeDtypeStruct((M, C), jnp.float32),
        grid=(B,),                                        # parallel over batch
        in_specs=[
            pl.BlockSpec((N, C), lambda b: (b, 0)),       # x rows of batch b
            full_spec(params["wqkv_h"]), full_spec(params["bqkv_h"]),
            full_spec(params["qn_w"]), full_spec(params["qn_b"]),
            full_spec(params["kn_w"]), full_spec(params["kn_b"]),
            full_spec(params["eh"]),
            full_spec(params["ln_w"]), full_spec(params["ln_b"]),
            full_spec(params["w1"]), full_spec(params["b1"]),
            full_spec(params["w2"]), full_spec(params["b2"]),
        ],
        out_specs=pl.BlockSpec((N, C), lambda b: (b, 0)),
        compiler_params=pltpu.CompilerParams(
            dimension_semantics=("parallel",),            # v7x: shard across 2 TCs
            vmem_limit_bytes=32 * 1024 * 1024,
        ),
    )(x2d, params["wqkv_h"], params["bqkv_h"],
      params["qn_w"], params["qn_b"], params["kn_w"], params["kn_b"],
      params["eh"], params["ln_w"], params["ln_b"],
      params["w1"], params["b1"], params["w2"], params["b2"])
    return out2d.reshape(B, N, C)


# ------------------------- pure-JAX reference (mirrors PyTorch) -------------------------
def _ref_block(x, raw, *, num_heads):
    B, N, C = x.shape
    D = C // num_heads
    scale = D ** (-0.5)
    eps = 1e-5

    def ln(v, w, b):
        mu = jnp.mean(v, axis=-1, keepdims=True)
        var = jnp.mean((v - mu) ** 2, axis=-1, keepdims=True)
        return (v - mu) / jnp.sqrt(var + eps) * w + b

    qkv = x @ raw["qkv_w"].T + raw["qkv_b"]                    # (B, N, 3C)
    qkv = qkv.reshape(B, N, 3, num_heads, D).transpose(2, 0, 3, 1, 4)
    q, k, v = qkv[0], qkv[1], qkv[2]                           # (B, H, N, D)
    q = ln(q, raw["qn_w"], raw["qn_b"]) * scale
    k = ln(k, raw["kn_w"], raw["kn_b"])
    s = jnp.einsum("bhqd,bhkd->bhqk", q, k)
    a = jax.nn.softmax(s, axis=-1)
    o = jnp.einsum("bhqk,bhkd->bhqd", a, v)                    # (B, H, N, D)
    attn = o.transpose(0, 2, 1, 3).reshape(B, N, C)

    x1 = x + attn
    xl = ln(x1, raw["ln_w"], raw["ln_b"])
    h = xl @ raw["fc1_w"].T + raw["fc1_b"]
    g = 0.5 * h * (1.0 + lax.erf(h / math.sqrt(2.0)))
    y = g @ raw["fc2_w"].T + raw["fc2_b"]
    return x1 + y


if __name__ == "__main__":
    B, N = 2, 8
    embed_dim, hidden_dim, num_heads = 32, 64, 4
    head_dim = embed_dim // num_heads

    key = jax.random.PRNGKey(0)
    ks = jax.random.split(key, 13)
    rnd = lambda k, shape, s=0.02: (s * jax.random.normal(k, shape)).astype(jnp.float32)

    # Parameters in native PyTorch layout (Linear weight = (out_features, in_features)).
    raw = {
        "qkv_w": rnd(ks[0], (3 * embed_dim, embed_dim)),
        "qkv_b": rnd(ks[1], (3 * embed_dim,)),
        "qn_w": jnp.ones((head_dim,), jnp.float32) + rnd(ks[2], (head_dim,)),
        "qn_b": rnd(ks[3], (head_dim,)),
        "kn_w": jnp.ones((head_dim,), jnp.float32) + rnd(ks[4], (head_dim,)),
        "kn_b": rnd(ks[5], (head_dim,)),
        "ln_w": jnp.ones((embed_dim,), jnp.float32) + rnd(ks[6], (embed_dim,)),
        "ln_b": rnd(ks[7], (embed_dim,)),
        "fc1_w": rnd(ks[8], (hidden_dim, embed_dim)),
        "fc1_b": rnd(ks[9], (hidden_dim,)),
        "fc2_w": rnd(ks[10], (embed_dim, hidden_dim)),
        "fc2_b": rnd(ks[11], (embed_dim,)),
    }
    x = jax.random.normal(ks[12], (B, N, embed_dim), jnp.float32)

    ref = _ref_block(x, raw, num_heads=num_heads)

    # f32 matmul path (faithful; only the approx softmax reciprocal differs).
    p32 = prepare_params(raw, num_heads=num_heads, matmul_dtype=jnp.float32)
    out32 = jax.block_until_ready(block_forward(x, p32, num_heads=num_heads))
    assert out32.shape == (B, N, embed_dim)
    assert jnp.allclose(out32, ref, atol=2e-3, rtol=2e-3), "f32 kernel mismatch vs reference"

    # Default bf16 matmul operands with f32 MXU accumulation (fast path on all
    # generations); elementwise math stays f32, so compare with looser tolerance.
    pbf = prepare_params(raw, num_heads=num_heads)            # bf16 default
    outbf = jax.block_until_ready(block_forward(x, pbf, num_heads=num_heads))
    assert outbf.shape == (B, N, embed_dim)
    assert jnp.allclose(outbf, ref, atol=5e-2, rtol=5e-2), "bf16 kernel mismatch vs reference"

    print("KERNEL_OK")
</pallas_src>

<mosaic_0001>
module attributes {stable_mosaic.version = 11 : i64} {
  func.func @_block_kernel(%arg0: i32, %arg1: memref<8x32xf32, #tpu.memory_space<vmem>>, %arg2: memref<4x32x24xf32, #tpu.memory_space<vmem>>, %arg3: memref<4x1x24xf32, #tpu.memory_space<vmem>>, %arg4: memref<1x1x8xf32, #tpu.memory_space<vmem>>, %arg5: memref<1x1x8xf32, #tpu.memory_space<vmem>>, %arg6: memref<1x1x8xf32, #tpu.memory_space<vmem>>, %arg7: memref<1x1x8xf32, #tpu.memory_space<vmem>>, %arg8: memref<4x8x32xf32, #tpu.memory_space<vmem>>, %arg9: memref<1x32xf32, #tpu.memory_space<vmem>>, %arg10: memref<1x32xf32, #tpu.memory_space<vmem>>, %arg11: memref<32x64xf32, #tpu.memory_space<vmem>>, %arg12: memref<1x64xf32, #tpu.memory_space<vmem>>, %arg13: memref<64x32xf32, #tpu.memory_space<vmem>>, %arg14: memref<1x32xf32, #tpu.memory_space<vmem>>, %arg15: memref<8x32xf32, #tpu.memory_space<vmem>>) attributes {dimension_semantics = [#tpu.dimension_semantics<parallel>], iteration_bounds = array<i64: 2>, scalar_prefetch = 0 : i64, scratch_operands = 0 : i64, tpu.core_type = #tpu.core_type<tc>, window_params = [{transform_indices = @transform_0, window_bounds = array<i64: 8, 32>}, {pipeline_mode = #tpu.pipeline_mode<synchronous>, transform_indices = @transform_1, window_bounds = array<i64: 4, 32, 24>}, {pipeline_mode = #tpu.pipeline_mode<synchronous>, transform_indices = @transform_2, window_bounds = array<i64: 4, 1, 24>}, {pipeline_mode = #tpu.pipeline_mode<synchronous>, transform_indices = @transform_3, window_bounds = array<i64: 1, 1, 8>}, {pipeline_mode = #tpu.pipeline_mode<synchronous>, transform_indices = @transform_4, window_bounds = array<i64: 1, 1, 8>}, {pipeline_mode = #tpu.pipeline_mode<synchronous>, transform_indices = @transform_5, window_bounds = array<i64: 1, 1, 8>}, {pipeline_mode = #tpu.pipeline_mode<synchronous>, transform_indices = @transform_6, window_bounds = array<i64: 1, 1, 8>}, {pipeline_mode = #tpu.pipeline_mode<synchronous>, transform_indices = @transform_7, window_bounds = array<i64: 4, 8, 32>}, {pipeline_mode = #tpu.pipeline_mode<synchronous>, transform_indices = @transform_8, window_bounds = array<i64: 1, 32>}, {pipeline_mode = #tpu.pipeline_mode<synchronous>, transform_indices = @transform_9, window_bounds = array<i64: 1, 32>}, {pipeline_mode = #tpu.pipeline_mode<synchronous>, transform_indices = @transform_10, window_bounds = array<i64: 32, 64>}, {pipeline_mode = #tpu.pipeline_mode<synchronous>, transform_indices = @transform_11, window_bounds = array<i64: 1, 64>}, {pipeline_mode = #tpu.pipeline_mode<synchronous>, transform_indices = @transform_12, window_bounds = array<i64: 64, 32>}, {pipeline_mode = #tpu.pipeline_mode<synchronous>, transform_indices = @transform_13, window_bounds = array<i64: 1, 32>}, {transform_indices = @transform_14, window_bounds = array<i64: 8, 32>}]} {
    %c0 = arith.constant 0 : index
    %c0_0 = arith.constant 0 : index
    %0 = vector.load %arg1[%c0, %c0_0] : memref<8x32xf32, #tpu.memory_space<vmem>>, vector<8x32xf32>
    %1 = vector.shape_cast %0 : vector<8x32xf32> to vector<1x8x32xf32>
    %2 = vector.broadcast %1 : vector<1x8x32xf32> to vector<4x8x32xf32>
    %c0_1 = arith.constant 0 : index
    %c0_2 = arith.constant 0 : index
    %c0_3 = arith.constant 0 : index
    %3 = vector.load %arg2[%c0_1, %c0_2, %c0_3] : memref<4x32x24xf32, #tpu.memory_space<vmem>>, vector<4x32x24xf32>
    "tpu.trace_start"() <{level = 10 : i32, message = "hnc,hcd->hnd"}> : () -> ()
    %cst = arith.constant dense<0.000000e+00> : vector<4x8x24xf32>
    %4 = tpu.matmul %2, %3, %cst {dimension_numbers = #tpu.dot_dimension_numbers<[2], [1], [1], [2], [0, 0, 0, 1, 1, 2], [0], [0]>} : vector<4x8x32xf32>, vector<4x32x24xf32>, vector<4x8x24xf32> -> vector<4x8x24xf32>
    "tpu.trace_stop"() : () -> ()
    %c0_4 = arith.constant 0 : index
    %c0_5 = arith.constant 0 : index
    %c0_6 = arith.constant 0 : index
    %5 = vector.load %arg3[%c0_4, %c0_5, %c0_6] : memref<4x1x24xf32, #tpu.memory_space<vmem>>, vector<4x1x24xf32>
    %6 = vector.broadcast %5 : vector<4x1x24xf32> to vector<4x8x24xf32>
    %7 = arith.addf %4, %6 : vector<4x8x24xf32>
    %8 = vector.extract_strided_slice %7 {offsets = [0, 0, 0], sizes = [4, 8, 8], strides = [1, 1, 1]} : vector<4x8x24xf32> to vector<4x8x8xf32>
    %9 = vector.extract_strided_slice %7 {offsets = [0, 0, 8], sizes = [4, 8, 8], strides = [1, 1, 1]} : vector<4x8x24xf32> to vector<4x8x8xf32>
    %10 = vector.extract_strided_slice %7 {offsets = [0, 0, 16], sizes = [4, 8, 8], strides = [1, 1, 1]} : vector<4x8x24xf32> to vector<4x8x8xf32>
    %c0_7 = arith.constant 0 : index
    %c0_8 = arith.constant 0 : index
    %c0_9 = arith.constant 0 : index
    %11 = vector.load %arg4[%c0_7, %c0_8, %c0_9] : memref<1x1x8xf32, #tpu.memory_space<vmem>>, vector<1x1x8xf32>
    %c0_10 = arith.constant 0 : index
    %c0_11 = arith.constant 0 : index
    %c0_12 = arith.constant 0 : index
    %12 = vector.load %arg5[%c0_10, %c0_11, %c0_12] : memref<1x1x8xf32, #tpu.memory_space<vmem>>, vector<1x1x8xf32>
    %cst_13 = arith.constant dense<0.000000e+00> : vector<4x8xf32>
    %13 = vector.multi_reduction <add>, %8, %cst_13 [2] : vector<4x8x8xf32> to vector<4x8xf32>
    %14 = vector.shape_cast %13 : vector<4x8xf32> to vector<4x8x1xf32>
    %cst_14 = arith.constant 8.000000e+00 : f32
    %15 = vector.broadcast %cst_14 : f32 to vector<4x8x1xf32>
    %16 = arith.divf %14, %15 : vector<4x8x1xf32>
    %17 = vector.broadcast %16 : vector<4x8x1xf32> to vector<4x8x8xf32>
    %18 = arith.subf %8, %17 : vector<4x8x8xf32>
    %19 = arith.mulf %18, %18 : vector<4x8x8xf32>
    %cst_15 = arith.constant dense<0.000000e+00> : vector<4x8xf32>
    %20 = vector.multi_reduction <add>, %19, %cst_15 [2] : vector<4x8x8xf32> to vector<4x8xf32>
    %21 = vector.shape_cast %20 : vector<4x8xf32> to vector<4x8x1xf32>
    %cst_16 = arith.constant 8.000000e+00 : f32
    %22 = vector.broadcast %cst_16 : f32 to vector<4x8x1xf32>
    %23 = arith.divf %21, %22 : vector<4x8x1xf32>
    %24 = vector.broadcast %16 : vector<4x8x1xf32> to vector<4x8x8xf32>
    %25 = arith.subf %8, %24 : vector<4x8x8xf32>
    %cst_17 = arith.constant 9.99999974E-6 : f32
    %26 = vector.broadcast %cst_17 : f32 to vector<4x8x1xf32>
    %27 = arith.addf %23, %26 : vector<4x8x1xf32>
    %28 = math.rsqrt %27 : vector<4x8x1xf32>
    %29 = vector.broadcast %28 : vector<4x8x1xf32> to vector<4x8x8xf32>
    %30 = arith.mulf %25, %29 : vector<4x8x8xf32>
    %31 = vector.broadcast %11 : vector<1x1x8xf32> to vector<4x8x8xf32>
    %32 = arith.mulf %30, %31 : vector<4x8x8xf32>
    %33 = vector.broadcast %12 : vector<1x1x8xf32> to vector<4x8x8xf32>
    %34 = arith.addf %32, %33 : vector<4x8x8xf32>
    %c0_18 = arith.constant 0 : index
    %c0_19 = arith.constant 0 : index
    %c0_20 = arith.constant 0 : index
    %35 = vector.load %arg6[%c0_18, %c0_19, %c0_20] : memref<1x1x8xf32, #tpu.memory_space<vmem>>, vector<1x1x8xf32>
    %c0_21 = arith.constant 0 : index
    %c0_22 = arith.constant 0 : index
    %c0_23 = arith.constant 0 : index
    %36 = vector.load %arg7[%c0_21, %c0_22, %c0_23] : memref<1x1x8xf32, #tpu.memory_space<vmem>>, vector<1x1x8xf32>
    %cst_24 = arith.constant dense<0.000000e+00> : vector<4x8xf32>
    %37 = vector.multi_reduction <add>, %9, %cst_24 [2] : vector<4x8x8xf32> to vector<4x8xf32>
    %38 = vector.shape_cast %37 : vector<4x8xf32> to vector<4x8x1xf32>
    %cst_25 = arith.constant 8.000000e+00 : f32
    %39 = vector.broadcast %cst_25 : f32 to vector<4x8x1xf32>
    %40 = arith.divf %38, %39 : vector<4x8x1xf32>
    %41 = vector.broadcast %40 : vector<4x8x1xf32> to vector<4x8x8xf32>
    %42 = arith.subf %9, %41 : vector<4x8x8xf32>
    %43 = arith.mulf %42, %42 : vector<4x8x8xf32>
    %cst_26 = arith.constant dense<0.000000e+00> : vector<4x8xf32>
    %44 = vector.multi_reduction <add>, %43, %cst_26 [2] : vector<4x8x8xf32> to vector<4x8xf32>
    %45 = vector.shape_cast %44 : vector<4x8xf32> to vector<4x8x1xf32>
    %cst_27 = arith.constant 8.000000e+00 : f32
    %46 = vector.broadcast %cst_27 : f32 to vector<4x8x1xf32>
    %47 = arith.divf %45, %46 : vector<4x8x1xf32>
    %48 = vector.broadcast %40 : vector<4x8x1xf32> to vector<4x8x8xf32>
    %49 = arith.subf %9, %48 : vector<4x8x8xf32>
    %cst_28 = arith.constant 9.99999974E-6 : f32
    %50 = vector.broadcast %cst_28 : f32 to vector<4x8x1xf32>
    %51 = arith.addf %47, %50 : vector<4x8x1xf32>
    %52 = math.rsqrt %51 : vector<4x8x1xf32>
    %53 = vector.broadcast %52 : vector<4x8x1xf32> to vector<4x8x8xf32>
    %54 = arith.mulf %49, %53 : vector<4x8x8xf32>
    %55 = vector.broadcast %35 : vector<1x1x8xf32> to vector<4x8x8xf32>
    %56 = arith.mulf %54, %55 : vector<4x8x8xf32>
    %57 = vector.broadcast %36 : vector<1x1x8xf32> to vector<4x8x8xf32>
    %58 = arith.addf %56, %57 : vector<4x8x8xf32>
    "tpu.trace_start"() <{level = 10 : i32, message = "hqd,hkd->hqk"}> : () -> ()
    %cst_29 = arith.constant dense<0.000000e+00> : vector<4x8x8xf32>
    %59 = tpu.matmul %34, %58, %cst_29 {dimension_numbers = #tpu.dot_dimension_numbers<[2], [2], [1], [1], [0, 0, 0, 1, 1, 1], [0], [0]>} : vector<4x8x8xf32>, vector<4x8x8xf32>, vector<4x8x8xf32> -> vector<4x8x8xf32>
    "tpu.trace_stop"() : () -> ()
    %cst_30 = arith.constant dense<0xFF800000> : vector<4x8xf32>
    %60 = vector.multi_reduction <maximumf>, %59, %cst_30 [2] : vector<4x8x8xf32> to vector<4x8xf32>
    %61 = vector.shape_cast %60 : vector<4x8xf32> to vector<4x8x1xf32>
    %62 = vector.broadcast %61 : vector<4x8x1xf32> to vector<4x8x8xf32>
    %63 = arith.subf %59, %62 : vector<4x8x8xf32>
    %64 = math.exp %63 : vector<4x8x8xf32>
    %cst_31 = arith.constant dense<0.000000e+00> : vector<4x8xf32>
    %65 = vector.multi_reduction <add>, %64, %cst_31 [2] : vector<4x8x8xf32> to vector<4x8xf32>
    %66 = vector.shape_cast %65 : vector<4x8xf32> to vector<4x8x1xf32>
    %67 = tpu.reciprocal %66 {approx = true} : vector<4x8x1xf32> -> vector<4x8x1xf32>
    %68 = vector.broadcast %67 : vector<4x8x1xf32> to vector<4x8x8xf32>
    %69 = arith.mulf %64, %68 : vector<4x8x8xf32>
    "tpu.trace_start"() <{level = 10 : i32, message = "hqk,hkd->hqd"}> : () -> ()
    %cst_32 = arith.constant dense<0.000000e+00> : vector<4x8x8xf32>
    %70 = tpu.matmul %69, %10, %cst_32 {dimension_numbers = #tpu.dot_dimension_numbers<[2], [1], [1], [2], [0, 0, 0, 1, 1, 2], [0], [0]>} : vector<4x8x8xf32>, vector<4x8x8xf32>, vector<4x8x8xf32> -> vector<4x8x8xf32>
    "tpu.trace_stop"() : () -> ()
    %c0_33 = arith.constant 0 : index
    %c0_34 = arith.constant 0 : index
    %c0_35 = arith.constant 0 : index
    %71 = vector.load %arg8[%c0_33, %c0_34, %c0_35] : memref<4x8x32xf32, #tpu.memory_space<vmem>>, vector<4x8x32xf32>
    "tpu.trace_start"() <{level = 10 : i32, message = "hnd,hdc->hnc"}> : () -> ()
    %cst_36 = arith.constant dense<0.000000e+00> : vector<4x8x32xf32>
    %72 = tpu.matmul %70, %71, %cst_36 {dimension_numbers = #tpu.dot_dimension_numbers<[2], [1], [1], [2], [0, 0, 0, 1, 1, 2], [0], [0]>} : vector<4x8x8xf32>, vector<4x8x32xf32>, vector<4x8x32xf32> -> vector<4x8x32xf32>
    "tpu.trace_stop"() : () -> ()
    %cst_37 = arith.constant dense<0.000000e+00> : vector<8x32xf32>
    %73 = vector.multi_reduction <add>, %72, %cst_37 [0] : vector<4x8x32xf32> to vector<8x32xf32>
    %74 = arith.addf %0, %73 : vector<8x32xf32>
    %c0_38 = arith.constant 0 : index
    %c0_39 = arith.constant 0 : index
    %75 = vector.load %arg9[%c0_38, %c0_39] : memref<1x32xf32, #tpu.memory_space<vmem>>, vector<1x32xf32>
    %c0_40 = arith.constant 0 : index
    %c0_41 = arith.constant 0 : index
    %76 = vector.load %arg10[%c0_40, %c0_41] : memref<1x32xf32, #tpu.memory_space<vmem>>, vector<1x32xf32>
    %cst_42 = arith.constant dense<0.000000e+00> : vector<8xf32>
    %77 = vector.multi_reduction <add>, %74, %cst_42 [1] : vector<8x32xf32> to vector<8xf32>
    %78 = vector.shape_cast %77 : vector<8xf32> to vector<8x1xf32>
    %cst_43 = arith.constant 3.200000e+01 : f32
    %79 = vector.broadcast %cst_43 : f32 to vector<8x1xf32>
    %80 = arith.divf %78, %79 : vector<8x1xf32>
    %81 = vector.broadcast %80 : vector<8x1xf32> to vector<8x32xf32>
    %82 = arith.subf %74, %81 : vector<8x32xf32>
    %83 = arith.mulf %82, %82 : vector<8x32xf32>
    %cst_44 = arith.constant dense<0.000000e+00> : vector<8xf32>
    %84 = vector.multi_reduction <add>, %83, %cst_44 [1] : vector<8x32xf32> to vector<8xf32>
    %85 = vector.shape_cast %84 : vector<8xf32> to vector<8x1xf32>
    %cst_45 = arith.constant 3.200000e+01 : f32
    %86 = vector.broadcast %cst_45 : f32 to vector<8x1xf32>
    %87 = arith.divf %85, %86 : vector<8x1xf32>
    %88 = vector.broadcast %80 : vector<8x1xf32> to vector<8x32xf32>
    %89 = arith.subf %74, %88 : vector<8x32xf32>
    %cst_46 = arith.constant 9.99999974E-6 : f32
    %90 = vector.broadcast %cst_46 : f32 to vector<8x1xf32>
    %91 = arith.addf %87, %90 : vector<8x1xf32>
    %92 = math.rsqrt %91 : vector<8x1xf32>
    %93 = vector.broadcast %92 : vector<8x1xf32> to vector<8x32xf32>
    %94 = arith.mulf %89, %93 : vector<8x32xf32>
    %95 = vector.broadcast %75 : vector<1x32xf32> to vector<8x32xf32>
    %96 = arith.mulf %94, %95 : vector<8x32xf32>
    %97 = vector.broadcast %76 : vector<1x32xf32> to vector<8x32xf32>
    %98 = arith.addf %96, %97 : vector<8x32xf32>
    %c0_47 = arith.constant 0 : index
    %c0_48 = arith.constant 0 : index
    %99 = vector.load %arg11[%c0_47, %c0_48] : memref<32x64xf32, #tpu.memory_space<vmem>>, vector<32x64xf32>
    %cst_49 = arith.constant dense<0.000000e+00> : vector<8x64xf32>
    %100 = tpu.matmul %98, %99, %cst_49 {dimension_numbers = #tpu.dot_dimension_numbers<[1], [0], [0], [1], [0, 0, 1, 1], [], []>} : vector<8x32xf32>, vector<32x64xf32>, vector<8x64xf32> -> vector<8x64xf32>
    %c0_50 = arith.constant 0 : index
    %c0_51 = arith.constant 0 : index
    %101 = vector.load %arg12[%c0_50, %c0_51] : memref<1x64xf32, #tpu.memory_space<vmem>>, vector<1x64xf32>
    %102 = vector.broadcast %101 : vector<1x64xf32> to vector<8x64xf32>
    %103 = arith.addf %100, %102 : vector<8x64xf32>
    %cst_52 = arith.constant 5.000000e-01 : f32
    %104 = vector.broadcast %cst_52 : f32 to vector<8x64xf32>
    %105 = arith.mulf %104, %103 : vector<8x64xf32>
    %cst_53 = arith.constant 0.707106769 : f32
    %106 = vector.broadcast %cst_53 : f32 to vector<8x64xf32>
    %107 = arith.mulf %103, %106 : vector<8x64xf32>
    %108 = math.erf %107 : vector<8x64xf32>
    %cst_54 = arith.constant 1.000000e+00 : f32
    %109 = vector.broadcast %cst_54 : f32 to vector<8x64xf32>
    %110 = arith.addf %109, %108 : vector<8x64xf32>
    %111 = arith.mulf %105, %110 : vector<8x64xf32>
    %c0_55 = arith.constant 0 : index
    %c0_56 = arith.constant 0 : index
    %112 = vector.load %arg13[%c0_55, %c0_56] : memref<64x32xf32, #tpu.memory_space<vmem>>, vector<64x32xf32>
    %cst_57 = arith.constant dense<0.000000e+00> : vector<8x32xf32>
    %113 = tpu.matmul %111, %112, %cst_57 {dimension_numbers = #tpu.dot_dimension_numbers<[1], [0], [0], [1], [0, 0, 1, 1], [], []>} : vector<8x64xf32>, vector<64x32xf32>, vector<8x32xf32> -> vector<8x32xf32>
    %c0_58 = arith.constant 0 : index
    %c0_59 = arith.constant 0 : index
    %114 = vector.load %arg14[%c0_58, %c0_59] : memref<1x32xf32, #tpu.memory_space<vmem>>, vector<1x32xf32>
    %115 = vector.broadcast %114 : vector<1x32xf32> to vector<8x32xf32>
    %116 = arith.addf %113, %115 : vector<8x32xf32>
    %117 = arith.addf %74, %116 : vector<8x32xf32>
    %c0_60 = arith.constant 0 : index
    %c0_61 = arith.constant 0 : index
    %118 = vector.load %arg15[%c0_60, %c0_61] : memref<8x32xf32, #tpu.memory_space<vmem>>, vector<8x32xf32>
    tpu.vector_store %arg15[%c0_60, %c0_61], %117 {strides = array<i32>} : memref<8x32xf32, #tpu.memory_space<vmem>>, vector<8x32xf32>,
    return
  }
  func.func @transform_0(%arg0: i32) -> (i32, i32) {
    %c0_i32 = arith.constant 0 : i32
    %c0_i32_0 = arith.constant 0 : i32
    return %arg0, %c0_i32 : i32, i32
  }
  func.func @transform_1(%arg0: i32) -> (i32, i32, i32) {
    %c0_i32 = arith.constant 0 : i32
    %c0_i32_0 = arith.constant 0 : i32
    %c0_i32_1 = arith.constant 0 : i32
    %c0_i32_2 = arith.constant 0 : i32
    return %c0_i32, %c0_i32_0, %c0_i32_1 : i32, i32, i32
  }
  func.func @transform_2(%arg0: i32) -> (i32, i32, i32) {
    %c0_i32 = arith.constant 0 : i32
    %c0_i32_0 = arith.constant 0 : i32
    %c0_i32_1 = arith.constant 0 : i32
    %c0_i32_2 = arith.constant 0 : i32
    return %c0_i32, %c0_i32_0, %c0_i32_1 : i32, i32, i32
  }
  func.func @transform_3(%arg0: i32) -> (i32, i32, i32) {
    %c0_i32 = arith.constant 0 : i32
    %c0_i32_0 = arith.constant 0 : i32
    %c0_i32_1 = arith.constant 0 : i32
    %c0_i32_2 = arith.constant 0 : i32
    return %c0_i32, %c0_i32_0, %c0_i32_1 : i32, i32, i32
  }
  func.func @transform_4(%arg0: i32) -> (i32, i32, i32) {
    %c0_i32 = arith.constant 0 : i32
    %c0_i32_0 = arith.constant 0 : i32
    %c0_i32_1 = arith.constant 0 : i32
    %c0_i32_2 = arith.constant 0 : i32
    return %c0_i32, %c0_i32_0, %c0_i32_1 : i32, i32, i32
  }
  func.func @transform_5(%arg0: i32) -> (i32, i32, i32) {
    %c0_i32 = arith.constant 0 : i32
    %c0_i32_0 = arith.constant 0 : i32
    %c0_i32_1 = arith.constant 0 : i32
    %c0_i32_2 = arith.constant 0 : i32
    return %c0_i32, %c0_i32_0, %c0_i32_1 : i32, i32, i32
  }
  func.func @transform_6(%arg0: i32) -> (i32, i32, i32) {
    %c0_i32 = arith.constant 0 : i32
    %c0_i32_0 = arith.constant 0 : i32
    %c0_i32_1 = arith.constant 0 : i32
    %c0_i32_2 = arith.constant 0 : i32
    return %c0_i32, %c0_i32_0, %c0_i32_1 : i32, i32, i32
  }
  func.func @transform_7(%arg0: i32) -> (i32, i32, i32) {
    %c0_i32 = arith.constant 0 : i32
    %c0_i32_0 = arith.constant 0 : i32
    %c0_i32_1 = arith.constant 0 : i32
    %c0_i32_2 = arith.constant 0 : i32
    return %c0_i32, %c0_i32_0, %c0_i32_1 : i32, i32, i32
  }
  func.func @transform_8(%arg0: i32) -> (i32, i32) {
    %c0_i32 = arith.constant 0 : i32
    %c0_i32_0 = arith.constant 0 : i32
    %c0_i32_1 = arith.constant 0 : i32
    return %c0_i32, %c0_i32_0 : i32, i32
  }
  func.func @transform_9(%arg0: i32) -> (i32, i32) {
    %c0_i32 = arith.constant 0 : i32
    %c0_i32_0 = arith.constant 0 : i32
    %c0_i32_1 = arith.constant 0 : i32
    return %c0_i32, %c0_i32_0 : i32, i32
  }
  func.func @transform_10(%arg0: i32) -> (i32, i32) {
    %c0_i32 = arith.constant 0 : i32
    %c0_i32_0 = arith.constant 0 : i32
    %c0_i32_1 = arith.constant 0 : i32
    return %c0_i32, %c0_i32_0 : i32, i32
  }
  func.func @transform_11(%arg0: i32) -> (i32, i32) {
    %c0_i32 = arith.constant 0 : i32
    %c0_i32_0 = arith.constant 0 : i32
    %c0_i32_1 = arith.constant 0 : i32
    return %c0_i32, %c0_i32_0 : i32, i32
  }
  func.func @transform_12(%arg0: i32) -> (i32, i32) {
    %c0_i32 = arith.constant 0 : i32
    %c0_i32_0 = arith.constant 0 : i32
    %c0_i32_1 = arith.constant 0 : i32
    return %c0_i32, %c0_i32_0 : i32, i32
  }
  func.func @transform_13(%arg0: i32) -> (i32, i32) {
    %c0_i32 = arith.constant 0 : i32
    %c0_i32_0 = arith.constant 0 : i32
    %c0_i32_1 = arith.constant 0 : i32
    return %c0_i32, %c0_i32_0 : i32, i32
  }
  func.func @transform_14(%arg0: i32) -> (i32, i32) {
    %c0_i32 = arith.constant 0 : i32
    %c0_i32_0 = arith.constant 0 : i32
    return %arg0, %c0_i32 : i32, i32
  }
}

</mosaic_0001>

<llo_original>
// kernel: tpu_custom_call.1
$region0: #{tpu_custom_call.1}
  #allocation0 [shape = 'u32[]', space=smem, size = 0x4, offset = 0x4, fixed_abs, tag = 'smem constant byte address 0x4 - core index']
  #allocation1 [shape = 'u32[144,128]{1,0:T(1,128)}', space=vmem, size = 0x12000, scoped, tag = 'internal scratch']
  %s0 = inlined_call_operand.vmem [shape: f32[16,32], index: 0, kind: input, shape index: {}]
  %s1 = inlined_call_operand.vmem [shape: f32[4,32,24], index: 1, kind: input, shape index: {}]
  %s2 = inlined_call_operand.vmem [shape: f32[4,1,24], index: 2, kind: input, shape index: {}]
  %s3 = inlined_call_operand.vmem [shape: f32[1,1,8], index: 3, kind: input, shape index: {}]
  %s4 = inlined_call_operand.vmem [shape: f32[1,1,8], index: 4, kind: input, shape index: {}]
  %s5 = inlined_call_operand.vmem [shape: f32[1,1,8], index: 5, kind: input, shape index: {}]
  %s6 = inlined_call_operand.vmem [shape: f32[1,1,8], index: 6, kind: input, shape index: {}]
  %s7 = inlined_call_operand.vmem [shape: f32[4,8,32], index: 7, kind: input, shape index: {}]
  %s8 = inlined_call_operand.vmem [shape: f32[1,32], index: 8, kind: input, shape index: {}]
  %s9 = inlined_call_operand.vmem [shape: f32[1,32], index: 9, kind: input, shape index: {}]
  %s10 = inlined_call_operand.vmem [shape: f32[32,64], index: 10, kind: input, shape index: {}]
  %s11 = inlined_call_operand.vmem [shape: f32[1,64], index: 11, kind: input, shape index: {}]
  %s12 = inlined_call_operand.vmem [shape: f32[64,32], index: 12, kind: input, shape index: {}]
  %s13 = inlined_call_operand.vmem [shape: f32[1,32], index: 13, kind: input, shape index: {}]
  %s14 = inlined_call_operand.hbm [shape: f32[16,32], index: 14, kind: output, shape index: {}]
  %s15 = sld [smem:[#allocation0]]
  $region89: #{tpu_custom_call.1} parent=0
    _
  %s17 = ssub.s32 1, %s15
  %s18 = scalar_select 0, %s17, %s15
  $region1: #{tpu_custom_call.1} parent=0
    #allocation2 [shape = 'u8[8192]{0}', space=vmem, size = 0x2000, scoped, tag = 'output window, operand 0']
    #allocation3 [shape = 's32[2]{0}', space=sflag, size = 0x8, scoped, tag = 'scoped memory for tpu_custom_call.1']
    %19 = vsyncpa [#allocation3], 0
    %s20 = scalar_lea.sflag [#allocation3], 1
    %21 = vsyncpa %s20, 0
    loop: start=0, step=1, limit=4
    $region2: #{tpu_custom_call.1} parent=1 // loop_pre_header
      _
    $region3: #{tpu_custom_call.1} parent=1 // loop_header
      %s23 = sphi 0, %s27
      %p24 = scmp.ge.s32.totalorder %s23, 4
      %s33 = sphi 0, %s35
      %s36 = sphi 0, %s33
      %s37 = sphi 0, %s36
      %s53 = sphi 0, %s37
      %s57 = sphi 0, %s57
      %s59 = sphi 0, %s57
      %s60 = sphi 0, %s59
      %s74 = sphi 0, %s60
      %s78 = sphi 0, %s78
      %s80 = sphi 0, %s78
      %s81 = sphi 0, %s80
      %s95 = sphi 0, %s81
      %s99 = sphi 0, %s99
      %s101 = sphi 0, %s99
      %s102 = sphi 0, %s101
      %s116 = sphi 0, %s102
      %s120 = sphi 0, %s120
      %s122 = sphi 0, %s120
      %s123 = sphi 0, %s122
      %s137 = sphi 0, %s123
      %s141 = sphi 0, %s141
      %s143 = sphi 0, %s141
      %s144 = sphi 0, %s143
      %s158 = sphi 0, %s144
      %s162 = sphi 0, %s162
      %s164 = sphi 0, %s162
      %s165 = sphi 0, %s164
      %s179 = sphi 0, %s165
      %s183 = sphi 0, %s183
      %s185 = sphi 0, %s183
      %s186 = sphi 0, %s185
      %s200 = sphi 0, %s186
      %s204 = sphi 0, %s204
      %s206 = sphi 0, %s204
      %s207 = sphi 0, %s206
      %s221 = sphi 0, %s207
      %s225 = sphi 0, %s225
      %s227 = sphi 0, %s225
      %s228 = sphi 0, %s227
      %s242 = sphi 0, %s228
      %s246 = sphi 0, %s246
      %s248 = sphi 0, %s246
      %s249 = sphi 0, %s248
      %s263 = sphi 0, %s249
      %s267 = sphi 0, %s267
      %s269 = sphi 0, %s267
      %s270 = sphi 0, %s269
      %s284 = sphi 0, %s270
      %s288 = sphi 0, %s288
      %s290 = sphi 0, %s288
      %s291 = sphi 0, %s290
      %s305 = sphi 0, %s291
      %s309 = sphi 0, %s309
      %s311 = sphi 0, %s309
      %s312 = sphi 0, %s311
      %s326 = sphi 0, %s312
      %s332 = sphi 0, %s334
      %s335 = sphi 0, %s332
      %s336 = sphi 0, %s335
      %s352 = sphi 0, %s336
    $region4: #{tpu_custom_call.1} parent=1 // loop_header_branch
      %26 = sbr.rel (%p24) target = $region8
    $region5: #{tpu_custom_call.1} parent=1 // loop_body
      %s28 = ssub.s32 %s23, 1
      %s29 = ssub.s32 %s23, 2
      %s30 = sadd.s32 %s23, 1
      %s31 = ssub.s32 %s23, %s30
      %p32 = scmp.eq.s32.totalorder %s31, 0
      %s34 = sadd.s32 %s33, 1
      %s35 = scalar_select %p32, %s33, %s34
      %p38 = pneg %p32
      %p39 = scmp.eq.s32.totalorder %s23, 1
      %p40 = por %p38, %p39
      %p41 = scmp.ne.s32.totalorder %s33, %s36
      %p42 = scmp.eq.s32.totalorder %s23, 0
      %p43 = por %p41, %p42
      %p44 = scmp.ne.s32.totalorder %s33, %s36
      %p45 = scmp.eq.s32.totalorder %s28, 1
      %p46 = por %p44, %p45
      %p47 = scmp.ne.s32.totalorder %s36, %s37
      %p48 = scmp.eq.s32.totalorder %s28, 0
      %p49 = por %p47, %p48
      %p50 = scmp.ne.s32.totalorder %s36, %s37
      %p51 = scmp.eq.s32.totalorder %s29, 1
      %p52 = por %p50, %p51
      %p54 = scmp.ne.s32.totalorder %s37, %s53
      %p55 = scmp.eq.s32.totalorder %s29, 0
      %p56 = por %p54, %p55
      %s58 = sadd.s32 %s57, 1
      %p61 = scmp.eq.s32.totalorder %s23, 1
      %p62 = scmp.ne.s32.totalorder %s57, %s59
      %p63 = scmp.eq.s32.totalorder %s23, 0
      %p64 = por %p62, %p63
      %p65 = scmp.ne.s32.totalorder %s57, %s59
      %p66 = scmp.eq.s32.totalorder %s28, 1
      %p67 = por %p65, %p66
      %p68 = scmp.ne.s32.totalorder %s59, %s60
      %p69 = scmp.eq.s32.totalorder %s28, 0
      %p70 = por %p68, %p69
      %p71 = scmp.ne.s32.totalorder %s59, %s60
      %p72 = scmp.eq.s32.totalorder %s29, 1
      %p73 = por %p71, %p72
      %p75 = scmp.ne.s32.totalorder %s60, %s74
      %p76 = scmp.eq.s32.totalorder %s29, 0
      %p77 = por %p75, %p76
      %s79 = sadd.s32 %s78, 1
      %p82 = scmp.eq.s32.totalorder %s23, 1
      %p83 = scmp.ne.s32.totalorder %s78, %s80
      %p84 = scmp.eq.s32.totalorder %s23, 0
      %p85 = por %p83, %p84
      %p86 = scmp.ne.s32.totalorder %s78, %s80
      %p87 = scmp.eq.s32.totalorder %s28, 1
      %p88 = por %p86, %p87
      %p89 = scmp.ne.s32.totalorder %s80, %s81
      %p90 = scmp.eq.s32.totalorder %s28, 0
      %p91 = por %p89, %p90
      %p92 = scmp.ne.s32.totalorder %s80, %s81
      %p93 = scmp.eq.s32.totalorder %s29, 1
      %p94 = por %p92, %p93
      %p96 = scmp.ne.s32.totalorder %s81, %s95
      %p97 = scmp.eq.s32.totalorder %s29, 0
      %p98 = por %p96, %p97
      %s100 = sadd.s32 %s99, 1
      %p103 = scmp.eq.s32.totalorder %s23, 1
      %p104 = scmp.ne.s32.totalorder %s99, %s101
      %p105 = scmp.eq.s32.totalorder %s23, 0
      %p106 = por %p104, %p105
      %p107 = scmp.ne.s32.totalorder %s99, %s101
      %p108 = scmp.eq.s32.totalorder %s28, 1
      %p109 = por %p107, %p108
      %p110 = scmp.ne.s32.totalorder %s101, %s102
      %p111 = scmp.eq.s32.totalorder %s28, 0
      %p112 = por %p110, %p111
      %p113 = scmp.ne.s32.totalorder %s101, %s102
      %p114 = scmp.eq.s32.totalorder %s29, 1
      %p115 = por %p113, %p114
      %p117 = scmp.ne.s32.totalorder %s102, %s116
      %p118 = scmp.eq.s32.totalorder %s29, 0
      %p119 = por %p117, %p118
      %s121 = sadd.s32 %s120, 1
      %p124 = scmp.eq.s32.totalorder %s23, 1
      %p125 = scmp.ne.s32.totalorder %s120, %s122
      %p126 = scmp.eq.s32.totalorder %s23, 0
      %p127 = por %p125, %p126
      %p128 = scmp.ne.s32.totalorder %s120, %s122
      %p129 = scmp.eq.s32.totalorder %s28, 1
      %p130 = por %p128, %p129
      %p131 = scmp.ne.s32.totalorder %s122, %s123
      %p132 = scmp.eq.s32.totalorder %s28, 0
      %p133 = por %p131, %p132
      %p134 = scmp.ne.s32.totalorder %s122, %s123
      %p135 = scmp.eq.s32.totalorder %s29, 1
      %p136 = por %p134, %p135
      %p138 = scmp.ne.s32.totalorder %s123, %s137
      %p139 = scmp.eq.s32.totalorder %s29, 0
      %p140 = por %p138, %p139
      %s142 = sadd.s32 %s141, 1
      %p145 = scmp.eq.s32.totalorder %s23, 1
      %p146 = scmp.ne.s32.totalorder %s141, %s143
      %p147 = scmp.eq.s32.totalorder %s23, 0
      %p148 = por %p146, %p147
      %p149 = scmp.ne.s32.totalorder %s141, %s143
      %p150 = scmp.eq.s32.totalorder %s28, 1
      %p151 = por %p149, %p150
      %p152 = scmp.ne.s32.totalorder %s143, %s144
      %p153 = scmp.eq.s32.totalorder %s28, 0
      %p154 = por %p152, %p153
      %p155 = scmp.ne.s32.totalorder %s143, %s144
      %p156 = scmp.eq.s32.totalorder %s29, 1
      %p157 = por %p155, %p156
      %p159 = scmp.ne.s32.totalorder %s144, %s158
      %p160 = scmp.eq.s32.totalorder %s29, 0
      %p161 = por %p159, %p160
      %s163 = sadd.s32 %s162, 1
      %p166 = scmp.eq.s32.totalorder %s23, 1
      %p167 = scmp.ne.s32.totalorder %s162, %s164
      %p168 = scmp.eq.s32.totalorder %s23, 0
      %p169 = por %p167, %p168
      %p170 = scmp.ne.s32.totalorder %s162, %s164
      %p171 = scmp.eq.s32.totalorder %s28, 1
      %p172 = por %p170, %p171
      %p173 = scmp.ne.s32.totalorder %s164, %s165
      %p174 = scmp.eq.s32.totalorder %s28, 0
      %p175 = por %p173, %p174
      %p176 = scmp.ne.s32.totalorder %s164, %s165
      %p177 = scmp.eq.s32.totalorder %s29, 1
      %p178 = por %p176, %p177
      %p180 = scmp.ne.s32.totalorder %s165, %s179
      %p181 = scmp.eq.s32.totalorder %s29, 0
      %p182 = por %p180, %p181
      %s184 = sadd.s32 %s183, 1
      %p187 = scmp.eq.s32.totalorder %s23, 1
      %p188 = scmp.ne.s32.totalorder %s183, %s185
      %p189 = scmp.eq.s32.totalorder %s23, 0
      %p190 = por %p188, %p189
      %p191 = scmp.ne.s32.totalorder %s183, %s185
      %p192 = scmp.eq.s32.totalorder %s28, 1
      %p193 = por %p191, %p192
      %p194 = scmp.ne.s32.totalorder %s185, %s186
      %p195 = scmp.eq.s32.totalorder %s28, 0
      %p196 = por %p194, %p195
      %p197 = scmp.ne.s32.totalorder %s185, %s186
      %p198 = scmp.eq.s32.totalorder %s29, 1
      %p199 = por %p197, %p198
      %p201 = scmp.ne.s32.totalorder %s186, %s200
      %p202 = scmp.eq.s32.totalorder %s29, 0
      %p203 = por %p201, %p202
      %s205 = sadd.s32 %s204, 1
      %p208 = scmp.eq.s32.totalorder %s23, 1
      %p209 = scmp.ne.s32.totalorder %s204, %s206
      %p210 = scmp.eq.s32.totalorder %s23, 0
      %p211 = por %p209, %p210
      %p212 = scmp.ne.s32.totalorder %s204, %s206
      %p213 = scmp.eq.s32.totalorder %s28, 1
      %p214 = por %p212, %p213
      %p215 = scmp.ne.s32.totalorder %s206, %s207
      %p216 = scmp.eq.s32.totalorder %s28, 0
      %p217 = por %p215, %p216
      %p218 = scmp.ne.s32.totalorder %s206, %s207
      %p219 = scmp.eq.s32.totalorder %s29, 1
      %p220 = por %p218, %p219
      %p222 = scmp.ne.s32.totalorder %s207, %s221
      %p223 = scmp.eq.s32.totalorder %s29, 0
      %p224 = por %p222, %p223
      %s226 = sadd.s32 %s225, 1
      %p229 = scmp.eq.s32.totalorder %s23, 1
      %p230 = scmp.ne.s32.totalorder %s225, %s227
      %p231 = scmp.eq.s32.totalorder %s23, 0
      %p232 = por %p230, %p231
      %p233 = scmp.ne.s32.totalorder %s225, %s227
      %p234 = scmp.eq.s32.totalorder %s28, 1
      %p235 = por %p233, %p234
      %p236 = scmp.ne.s32.totalorder %s227, %s228
      %p237 = scmp.eq.s32.totalorder %s28, 0
      %p238 = por %p236, %p237
      %p239 = scmp.ne.s32.totalorder %s227, %s228
      %p240 = scmp.eq.s32.totalorder %s29, 1
      %p241 = por %p239, %p240
      %p243 = scmp.ne.s32.totalorder %s228, %s242
      %p244 = scmp.eq.s32.totalorder %s29, 0
      %p245 = por %p243, %p244
      %s247 = sadd.s32 %s246, 1
      %p250 = scmp.eq.s32.totalorder %s23, 1
      %p251 = scmp.ne.s32.totalorder %s246, %s248
      %p252 = scmp.eq.s32.totalorder %s23, 0
      %p253 = por %p251, %p252
      %p254 = scmp.ne.s32.totalorder %s246, %s248
      %p255 = scmp.eq.s32.totalorder %s28, 1
      %p256 = por %p254, %p255
      %p257 = scmp.ne.s32.totalorder %s248, %s249
      %p258 = scmp.eq.s32.totalorder %s28, 0
      %p259 = por %p257, %p258
      %p260 = scmp.ne.s32.totalorder %s248, %s249
      %p261 = scmp.eq.s32.totalorder %s29, 1
      %p262 = por %p260, %p261
      %p264 = scmp.ne.s32.totalorder %s249, %s263
      %p265 = scmp.eq.s32.totalorder %s29, 0
      %p266 = por %p264, %p265
      %s268 = sadd.s32 %s267, 1
      %p271 = scmp.eq.s32.totalorder %s23, 1
      %p272 = scmp.ne.s32.totalorder %s267, %s269
      %p273 = scmp.eq.s32.totalorder %s23, 0
      %p274 = por %p272, %p273
      %p275 = scmp.ne.s32.totalorder %s267, %s269
      %p276 = scmp.eq.s32.totalorder %s28, 1
      %p277 = por %p275, %p276
      %p278 = scmp.ne.s32.totalorder %s269, %s270
      %p279 = scmp.eq.s32.totalorder %s28, 0
      %p280 = por %p278, %p279
      %p281 = scmp.ne.s32.totalorder %s269, %s270
      %p282 = scmp.eq.s32.totalorder %s29, 1
      %p283 = por %p281, %p282
      %p285 = scmp.ne.s32.totalorder %s270, %s284
      %p286 = scmp.eq.s32.totalorder %s29, 0
      %p287 = por %p285, %p286
      %s289 = sadd.s32 %s288, 1
      %p292 = scmp.eq.s32.totalorder %s23, 1
      %p293 = scmp.ne.s32.totalorder %s288, %s290
      %p294 = scmp.eq.s32.totalorder %s23, 0
      %p295 = por %p293, %p294
      %p296 = scmp.ne.s32.totalorder %s288, %s290
      %p297 = scmp.eq.s32.totalorder %s28, 1
      %p298 = por %p296, %p297
      %p299 = scmp.ne.s32.totalorder %s290, %s291
      %p300 = scmp.eq.s32.totalorder %s28, 0
      %p301 = por %p299, %p300
      %p302 = scmp.ne.s32.totalorder %s290, %s291
      %p303 = scmp.eq.s32.totalorder %s29, 1
      %p304 = por %p302, %p303
      %p306 = scmp.ne.s32.totalorder %s291, %s305
      %p307 = scmp.eq.s32.totalorder %s29, 0
      %p308 = por %p306, %p307
      %s310 = sadd.s32 %s309, 1
      %p313 = scmp.eq.s32.totalorder %s23, 1
      %p314 = scmp.ne.s32.totalorder %s309, %s311
      %p315 = scmp.eq.s32.totalorder %s23, 0
      %p316 = por %p314, %p315
      %p317 = scmp.ne.s32.totalorder %s309, %s311
      %p318 = scmp.eq.s32.totalorder %s28, 1
      %p319 = por %p317, %p318
      %p320 = scmp.ne.s32.totalorder %s311, %s312
      %p321 = scmp.eq.s32.totalorder %s28, 0
      %p322 = por %p320, %p321
      %p323 = scmp.ne.s32.totalorder %s311, %s312
      %p324 = scmp.eq.s32.totalorder %s29, 1
      %p325 = por %p323, %p324
      %p327 = scmp.ne.s32.totalorder %s312, %s326
      %p328 = scmp.eq.s32.totalorder %s29, 0
      %p329 = por %p327, %p328
      %s330 = ssub.s32 %s23, %s30
      %p331 = scmp.eq.s32.totalorder %s330, 0
      %s333 = sadd.s32 %s332, 1
      %s334 = scalar_select %p331, %s332, %s333
      %p337 = pneg %p331
      %p338 = scmp.eq.s32.totalorder %s23, 1
      %p339 = por %p337, %p338
      %p340 = scmp.ne.s32.totalorder %s332, %s335
      %p341 = scmp.eq.s32.totalorder %s23, 0
      %p342 = por %p340, %p341
      %p343 = scmp.ne.s32.totalorder %s332, %s335
      %p344 = scmp.eq.s32.totalorder %s28, 1
      %p345 = por %p343, %p344
      %p346 = scmp.ne.s32.totalorder %s335, %s336
      %p347 = scmp.eq.s32.totalorder %s28, 0
      %p348 = por %p346, %p347
      %p349 = scmp.ne.s32.totalorder %s335, %s336
      %p350 = scmp.eq.s32.totalorder %s29, 1
      %p351 = por %p349, %p350
      %p353 = scmp.ne.s32.totalorder %s336, %s352
      %p354 = scmp.eq.s32.totalorder %s29, 0
      %p355 = por %p353, %p354
      %p356 = scmp.le.s32.totalorder 1, %s23
      %p357 = scmp.lt.s32.totalorder %s23, 3
      %p358 = pnand %p356, %p357
      %p359 = pneg %p358
      // Predicated region
      $region9: #{tpu_custom_call.1} parent=5 // pred_check
        _
      $region10: #{tpu_custom_call.1} parent=5 // pred_check_branch
        %361 = sbr.rel (%p358) target = $region12
      $region11: #{tpu_custom_call.1} parent=5 // pred_region
        %s362 = ssub.s32 %s23, 1
        // Predicated region
        $region13: #{tpu_custom_call.1} parent=11 // pred_check
          %p363 = pneg %p70
        $region14: #{tpu_custom_call.1} parent=11 // pred_check_branch
          %365 = sbr.rel (%p363) target = $region16
        $region15: #{tpu_custom_call.1} parent=11 // pred_region
          _
        $region16: #{tpu_custom_call.1} parent=11 // pred_fallthru
          _
        // Predicated region
        $region17: #{tpu_custom_call.1} parent=11 // pred_check
          %p366 = pneg %p91
        $region18: #{tpu_custom_call.1} parent=11 // pred_check_branch
          %368 = sbr.rel (%p366) target = $region20
        $region19: #{tpu_custom_call.1} parent=11 // pred_region
          _
        $region20: #{tpu_custom_call.1} parent=11 // pred_fallthru
          _
        // Predicated region
        $region21: #{tpu_custom_call.1} parent=11 // pred_check
          %p369 = pneg %p112
        $region22: #{tpu_custom_call.1} parent=11 // pred_check_branch
          %371 = sbr.rel (%p369) target = $region24
        $region23: #{tpu_custom_call.1} parent=11 // pred_region
          _
        $region24: #{tpu_custom_call.1} parent=11 // pred_fallthru
          _
        // Predicated region
        $region25: #{tpu_custom_call.1} parent=11 // pred_check
          %p372 = pneg %p133
        $region26: #{tpu_custom_call.1} parent=11 // pred_check_branch
          %374 = sbr.rel (%p372) target = $region28
        $region27: #{tpu_custom_call.1} parent=11 // pred_region
          _
        $region28: #{tpu_custom_call.1} parent=11 // pred_fallthru
          _
        // Predicated region
        $region29: #{tpu_custom_call.1} parent=11 // pred_check
          %p375 = pneg %p154
        $region30: #{tpu_custom_call.1} parent=11 // pred_check_branch
          %377 = sbr.rel (%p375) target = $region32
        $region31: #{tpu_custom_call.1} parent=11 // pred_region
          _
        $region32: #{tpu_custom_call.1} parent=11 // pred_fallthru
          _
        // Predicated region
        $region33: #{tpu_custom_call.1} parent=11 // pred_check
          %p378 = pneg %p175
        $region34: #{tpu_custom_call.1} parent=11 // pred_check_branch
          %380 = sbr.rel (%p378) target = $region36
        $region35: #{tpu_custom_call.1} parent=11 // pred_region
          _
        $region36: #{tpu_custom_call.1} parent=11 // pred_fallthru
          _
        // Predicated region
        $region37: #{tpu_custom_call.1} parent=11 // pred_check
          %p381 = pneg %p196
        $region38: #{tpu_custom_call.1} parent=11 // pred_check_branch
          %383 = sbr.rel (%p381) target = $region40
        $region39: #{tpu_custom_call.1} parent=11 // pred_region
          _
        $region40: #{tpu_custom_call.1} parent=11 // pred_fallthru
          _
        // Predicated region
        $region41: #{tpu_custom_call.1} parent=11 // pred_check
          %p384 = pneg %p217
        $region42: #{tpu_custom_call.1} parent=11 // pred_check_branch
          %386 = sbr.rel (%p384) target = $region44
        $region43: #{tpu_custom_call.1} parent=11 // pred_region
          _
        $region44: #{tpu_custom_call.1} parent=11 // pred_fallthru
          _
        // Predicated region
        $region45: #{tpu_custom_call.1} parent=11 // pred_check
          %p387 = pneg %p238
        $region46: #{tpu_custom_call.1} parent=11 // pred_check_branch
          %389 = sbr.rel (%p387) target = $region48
        $region47: #{tpu_custom_call.1} parent=11 // pred_region
          _
        $region48: #{tpu_custom_call.1} parent=11 // pred_fallthru
          _
        // Predicated region
        $region49: #{tpu_custom_call.1} parent=11 // pred_check
          %p390 = pneg %p259
        $region50: #{tpu_custom_call.1} parent=11 // pred_check_branch
          %392 = sbr.rel (%p390) target = $region52
        $region51: #{tpu_custom_call.1} parent=11 // pred_region
          _
        $region52: #{tpu_custom_call.1} parent=11 // pred_fallthru
          _
        // Predicated region
        $region53: #{tpu_custom_call.1} parent=11 // pred_check
          %p393 = pneg %p280
        $region54: #{tpu_custom_call.1} parent=11 // pred_check_branch
          %395 = sbr.rel (%p393) target = $region56
        $region55: #{tpu_custom_call.1} parent=11 // pred_region
          _
        $region56: #{tpu_custom_call.1} parent=11 // pred_fallthru
          _
        // Predicated region
        $region57: #{tpu_custom_call.1} parent=11 // pred_check
          %p396 = pneg %p301
        $region58: #{tpu_custom_call.1} parent=11 // pred_check_branch
          %398 = sbr.rel (%p396) target = $region60
        $region59: #{tpu_custom_call.1} parent=11 // pred_region
          _
        $region60: #{tpu_custom_call.1} parent=11 // pred_fallthru
          _
        // Predicated region
        $region61: #{tpu_custom_call.1} parent=11 // pred_check
          %p399 = pneg %p322
        $region62: #{tpu_custom_call.1} parent=11 // pred_check_branch
          %401 = sbr.rel (%p399) target = $region64
        $region63: #{tpu_custom_call.1} parent=11 // pred_region
          _
        $region64: #{tpu_custom_call.1} parent=11 // pred_fallthru
          _
      $region12: #{tpu_custom_call.1} parent=5 // pred_fallthru
        _
      %p402 = scmp.lt.s32.totalorder %s23, 2
      // Predicated region
      $region65: #{tpu_custom_call.1} parent=5 // pred_check
        %p403 = pneg %p402
      $region66: #{tpu_custom_call.1} parent=5 // pred_check_branch
        %405 = sbr.rel (%p403) target = $region68
      $region67: #{tpu_custom_call.1} parent=5 // pred_region
        // Predicated region
        $region69: #{tpu_custom_call.1} parent=67 // pred_check
          %p406 = pneg %p43
        $region70: #{tpu_custom_call.1} parent=67 // pred_check_branch
          %408 = sbr.rel (%p406) target = $region72
        $region71: #{tpu_custom_call.1} parent=67 // pred_region
          %p409 = scmp.lt.s32.totalorder %s23, 1
          %s410 = scalar_select %p409, %s23, 1
          %s411 = smul.addr %s410, 8
          %s412 = scalar_lea.vmem %s0, %s411
        $region72: #{tpu_custom_call.1} parent=67 // pred_fallthru
          _
      $region68: #{tpu_custom_call.1} parent=5 // pred_fallthru
        _
      %p413 = scmp.le.s32.totalorder 1, %s23
      %p414 = scmp.lt.s32.totalorder %s23, 3
      %p415 = pnand %p413, %p414
      %p416 = pneg %p415
      // Predicated region
      $region73: #{tpu_custom_call.1} parent=5 // pred_check
        _
      $region74: #{tpu_custom_call.1} parent=5 // pred_check_branch
        %418 = sbr.rel (%p415) target = $region76
      $region75: #{tpu_custom_call.1} parent=5 // pred_region
        %s419 = ssub.s32 %s23, 1
        %p420 = scmp.lt.s32.totalorder %s28, 1
        %s421 = scalar_select %p420, %s28, 1
        %s422 = smul.addr %s421, 8
        %s423 = scalar_lea.vmem %s0, %s422
        %p424 = pneg %p49
        %p425 = pneg %p46
        %p426 = pneg %p70
        %p427 = pneg %p67
        %p428 = pneg %p91
        %p429 = pneg %p88
        %p430 = pneg %p112
        %p431 = pneg %p109
        %p432 = pneg %p133
        %p433 = pneg %p130
        %p434 = pneg %p154
        %p435 = pneg %p151
        %p436 = pneg %p175
        %p437 = pneg %p172
        %p438 = pneg %p196
        %p439 = pneg %p193
        %p440 = pneg %p217
        %p441 = pneg %p214
        %p442 = pneg %p238
        %p443 = pneg %p235
        %p444 = pneg %p259
        %p445 = pneg %p256
        %p446 = pneg %p280
        %p447 = pneg %p277
        %p448 = pneg %p301
        %p449 = pneg %p298
        %p450 = pneg %p322
        %p451 = pneg %p319
        %p452 = pneg %p348
        %p453 = pneg %p345
        %s454 = sand.u32 %s335, 1
        %s455 = scalar_lea.sflag [#allocation3], %s454
        %s456 = sand.u32 %s335, 1
        %s457 = smul.addr %s456, 8
        %s458 = scalar_lea.vmem [#allocation2], %s457
        %p459 = scmp.lt.s32.totalorder %s28, 1
        %s460 = scalar_select %p459, %s28, 1
        %s461 = smul.addr %s460, 8
        %s462 = scalar_lea.vmem %s0, %s461
        %v463 = vld [vmem:[%s462] sm:$0xff]
        %v464 = vld [vmem:[%s1] sm:$0xff]
        %v465 = vld [vmem:[%s1 + $0x8] sm:$0xff]
        %v466 = vld [vmem:[%s1 + $0x10] sm:$0xff]
        %v467 = vld [vmem:[%s1 + $0x18] sm:$0xff]
        %v468 = vld [vmem:[%s1 + $0x20] sm:$0xff]
        %v469 = vld [vmem:[%s1 + $0x28] sm:$0xff]
        %v470 = vld [vmem:[%s1 + $0x30] sm:$0xff]
        %v471 = vld [vmem:[%s1 + $0x38] sm:$0xff]
        %v472 = vld [vmem:[%s1 + $0x40] sm:$0xff]
        %v473 = vld [vmem:[%s1 + $0x48] sm:$0xff]
        %v474 = vld [vmem:[%s1 + $0x50] sm:$0xff]
        %v475 = vld [vmem:[%s1 + $0x58] sm:$0xff]
        %v476 = vld [vmem:[%s1 + $0x60] sm:$0xff]
        %v477 = vld [vmem:[%s1 + $0x68] sm:$0xff]
        %v478 = vld [vmem:[%s1 + $0x70] sm:$0xff]
        %v479 = vld [vmem:[%s1 + $0x78] sm:$0xff]
        %v480 = vld [vmem:[%s2] sm:$0x1]
        %v481 = vld [vmem:[%s2 + $0x1] sm:$0x1]
        %v482 = vld [vmem:[%s2 + $0x2] sm:$0x1]
        %v483 = vld [vmem:[%s2 + $0x3] sm:$0x1]
        %v488 = vlaneseq
        %v489 = vshrl.u32 %v488, 7
        %v490 = vsub.s32 0, %v489
        %v491 = vrot.slane %v480, %v490
        %v492 = vlaneseq
        %v493 = vshrl.u32 %v492, 7
        %v494 = vsub.s32 0, %v493
        %v495 = vrot.slane %v481, %v494
        %v496 = vlaneseq
        %v497 = vshrl.u32 %v496, 7
        %v498 = vsub.s32 0, %v497
        %v499 = vrot.slane %v482, %v498
        %v500 = vlaneseq
        %v501 = vshrl.u32 %v500, 7
        %v502 = vsub.s32 0, %v501
        %v503 = vrot.slane %v483, %v502
        %vm508 = vcmask 261120
        %v510 = vsel %vm508, %v463, 0
        %512 = vmatprep.subr.mxu0 0.0
        %513 = vmatpush1.msra.mxu0 %v464
        %514 = vmatprep.subr.mxu0 0.0
        %515 = vmatpush1.msra.mxu0 %v465
        %516 = vmatprep.subr.mxu0 0.0
        %517 = vmatpush1.msra.mxu0 %v466
        %518 = vmatprep.subr.mxu0 0.0
        %519 = vmatpush1.msra.mxu0 %v467
        %520 = vmatprep.subr.mxu0 0.0
        %521 = vmatpush1.msra.mxu0 0.0
        %522 = vmatprep.subr.mxu0 0.0
        %523 = vmatpush1.msra.mxu0 0.0
        %524 = vmatprep.subr.mxu0 0.0
        %525 = vmatpush1.msra.mxu0 0.0
        %526 = vmatprep.subr.mxu0 0.0
        %527 = vmatpush1.msra.mxu0 0.0
        %528 = vmatprep.subr.mxu0 0.0
        %529 = vmatpush1.msra.mxu0 0.0
        %530 = vmatprep.subr.mxu0 0.0
        %531 = vmatpush1.msra.mxu0 0.0
        %532 = vmatprep.subr.mxu0 0.0
        %533 = vmatpush1.msra.mxu0 0.0
        %534 = vmatprep.subr.mxu0 0.0
        %535 = vmatpush1.msra.mxu0 0.0
        %536 = vmatprep.subr.mxu0 0.0
        %537 = vmatpush1.msra.mxu0 0.0
        %538 = vmatprep.subr.mxu0 0.0
        %539 = vmatpush1.msra.mxu0 0.0
        %540 = vmatprep.subr.mxu0 0.0
        %541 = vmatpush1.msra.mxu0 0.0
        %542 = vmatprep.subr.mxu0 0.0
        %543 = vmatpush1.msra.mxu0 0.0
        %544 = vmatprep.subr.mxu0 0.0
        %545 = vmatpush1.msra.mxu0 0.0
        %546 = vmatprep.subr.mxu0 0.0
        %547 = vmatpush1.msra.mxu0 0.0
        %548 = vmatprep.subr.mxu0 0.0
        %549 = vmatpush1.msra.mxu0 0.0
        %550 = vmatprep.subr.mxu0 0.0
        %551 = vmatpush1.msra.mxu0 0.0
        %552 = vmatprep.subr.mxu0 0.0
        %553 = vmatpush1.msra.mxu0 0.0
        %554 = vmatprep.subr.mxu0 0.0
        %555 = vmatpush1.msra.mxu0 0.0
        %556 = vmatprep.subr.mxu0 0.0
        %557 = vmatpush1.msra.mxu0 0.0
        %558 = vmatprep.subr.mxu0 0.0
        %559 = vmatpush1.msra.mxu0 0.0
        %560 = vmatprep.subr.mxu0 0.0
        %561 = vmatpush1.msra.mxu0 0.0
        %562 = vmatprep.subr.mxu0 0.0
        %563 = vmatpush1.msra.mxu0 0.0
        %564 = vmatprep.subr.mxu0 0.0
        %565 = vmatpush1.msra.mxu0 0.0
        %566 = vmatprep.subr.mxu0 0.0
        %567 = vmatpush1.msra.mxu0 0.0
        %568 = vmatprep.subr.mxu0 0.0
        %569 = vmatpush1.msra.mxu0 0.0
        %570 = vmatprep.subr.mxu0 0.0
        %571 = vmatpush1.msra.mxu0 0.0
        %572 = vmatprep.subr.mxu0 0.0
        %573 = vmatpush1.msra.mxu0 0.0
        %574 = vmatprep.subr.mxu0 0.0
        %575 = vmatpush1.msra.mxu0 0.0
        %576 = vmatprep.mubr.f32.mxu0 0.0
        %577 = vmatmul.mubr.f32.gmra.mrb[0].mxu0 %v510
        %v578 = vpop.f32.mrb[0].mxu0
        %v579 = vadd.f32 %v491, %v578
        %v580 = vpop.f32.mrb[0].mxu0
        %581 = vdwg.mxu0
        %582 = vmatprep.subr.mxu0 0.0
        %583 = vmatpush1.msra.mxu0 %v468
        %584 = vmatprep.subr.mxu0 0.0
        %585 = vmatpush1.msra.mxu0 %v469
        %586 = vmatprep.subr.mxu0 0.0
        %587 = vmatpush1.msra.mxu0 %v470
        %588 = vmatprep.subr.mxu0 0.0
        %589 = vmatpush1.msra.mxu0 %v471
        %590 = vmatprep.subr.mxu0 0.0
        %591 = vmatpush1.msra.mxu0 0.0
        %592 = vmatprep.subr.mxu0 0.0
        %593 = vmatpush1.msra.mxu0 0.0
        %594 = vmatprep.subr.mxu0 0.0
        %595 = vmatpush1.msra.mxu0 0.0
        %596 = vmatprep.subr.mxu0 0.0
        %597 = vmatpush1.msra.mxu0 0.0
        %598 = vmatprep.subr.mxu0 0.0
        %599 = vmatpush1.msra.mxu0 0.0
        %600 = vmatprep.subr.mxu0 0.0
        %601 = vmatpush1.msra.mxu0 0.0
        %602 = vmatprep.subr.mxu0 0.0
        %603 = vmatpush1.msra.mxu0 0.0
        %604 = vmatprep.subr.mxu0 0.0
        %605 = vmatpush1.msra.mxu0 0.0
        %606 = vmatprep.subr.mxu0 0.0
        %607 = vmatpush1.msra.mxu0 0.0
        %608 = vmatprep.subr.mxu0 0.0
        %609 = vmatpush1.msra.mxu0 0.0
        %610 = vmatprep.subr.mxu0 0.0
        %611 = vmatpush1.msra.mxu0 0.0
        %612 = vmatprep.subr.mxu0 0.0
        %613 = vmatpush1.msra.mxu0 0.0
        %614 = vmatprep.subr.mxu0 0.0
        %615 = vmatpush1.msra.mxu0 0.0
        %616 = vmatprep.subr.mxu0 0.0
        %617 = vmatpush1.msra.mxu0 0.0
        %618 = vmatprep.subr.mxu0 0.0
        %619 = vmatpush1.msra.mxu0 0.0
        %620 = vmatprep.subr.mxu0 0.0
        %621 = vmatpush1.msra.mxu0 0.0
        %622 = vmatprep.subr.mxu0 0.0
        %623 = vmatpush1.msra.mxu0 0.0
        %624 = vmatprep.subr.mxu0 0.0
        %625 = vmatpush1.msra.mxu0 0.0
        %626 = vmatprep.subr.mxu0 0.0
        %627 = vmatpush1.msra.mxu0 0.0
        %628 = vmatprep.subr.mxu0 0.0
        %629 = vmatpush1.msra.mxu0 0.0
        %630 = vmatprep.subr.mxu0 0.0
        %631 = vmatpush1.msra.mxu0 0.0
        %632 = vmatprep.subr.mxu0 0.0
        %633 = vmatpush1.msra.mxu0 0.0
        %634 = vmatprep.subr.mxu0 0.0
        %635 = vmatpush1.msra.mxu0 0.0
        %636 = vmatprep.subr.mxu0 0.0
        %637 = vmatpush1.msra.mxu0 0.0
        %638 = vmatprep.subr.mxu0 0.0
        %639 = vmatpush1.msra.mxu0 0.0
        %640 = vmatprep.subr.mxu0 0.0
        %641 = vmatpush1.msra.mxu0 0.0
        %642 = vmatprep.subr.mxu0 0.0
        %643 = vmatpush1.msra.mxu0 0.0
        %644 = vmatprep.subr.mxu0 0.0
        %645 = vmatpush1.msra.mxu0 0.0
        %646 = vmatprep.mubr.f32.mxu0 0.0
        %647 = vmatmul.mubr.f32.gmra.mrb[0].mxu0 %v510
        %v648 = vpop.f32.mrb[0].mxu0
        %v649 = vadd.f32 %v495, %v648
        %v650 = vpop.f32.mrb[0].mxu0
        %651 = vdwg.mxu0
        %652 = vmatprep.subr.mxu0 0.0
        %653 = vmatpush1.msra.mxu0 %v472
        %654 = vmatprep.subr.mxu0 0.0
        %655 = vmatpush1.msra.mxu0 %v473
        %656 = vmatprep.subr.mxu0 0.0
        %657 = vmatpush1.msra.mxu0 %v474
        %658 = vmatprep.subr.mxu0 0.0
        %659 = vmatpush1.msra.mxu0 %v475
        %660 = vmatprep.subr.mxu0 0.0
        %661 = vmatpush1.msra.mxu0 0.0
        %662 = vmatprep.subr.mxu0 0.0
        %663 = vmatpush1.msra.mxu0 0.0
        %664 = vmatprep.subr.mxu0 0.0
        %665 = vmatpush1.msra.mxu0 0.0
        %666 = vmatprep.subr.mxu0 0.0
        %667 = vmatpush1.msra.mxu0 0.0
        %668 = vmatprep.subr.mxu0 0.0
        %669 = vmatpush1.msra.mxu0 0.0
        %670 = vmatprep.subr.mxu0 0.0
        %671 = vmatpush1.msra.mxu0 0.0
        %672 = vmatprep.subr.mxu0 0.0
        %673 = vmatpush1.msra.mxu0 0.0
        %674 = vmatprep.subr.mxu0 0.0
        %675 = vmatpush1.msra.mxu0 0.0
        %676 = vmatprep.subr.mxu0 0.0
        %677 = vmatpush1.msra.mxu0 0.0
        %678 = vmatprep.subr.mxu0 0.0
        %679 = vmatpush1.msra.mxu0 0.0
        %680 = vmatprep.subr.mxu0 0.0
        %681 = vmatpush1.msra.mxu0 0.0
        %682 = vmatprep.subr.mxu0 0.0
        %683 = vmatpush1.msra.mxu0 0.0
        %684 = vmatprep.subr.mxu0 0.0
        %685 = vmatpush1.msra.mxu0 0.0
        %686 = vmatprep.subr.mxu0 0.0
        %687 = vmatpush1.msra.mxu0 0.0
        %688 = vmatprep.subr.mxu0 0.0
        %689 = vmatpush1.msra.mxu0 0.0
        %690 = vmatprep.subr.mxu0 0.0
        %691 = vmatpush1.msra.mxu0 0.0
        %692 = vmatprep.subr.mxu0 0.0
        %693 = vmatpush1.msra.mxu0 0.0
        %694 = vmatprep.subr.mxu0 0.0
        %695 = vmatpush1.msra.mxu0 0.0
        %696 = vmatprep.subr.mxu0 0.0
        %697 = vmatpush1.msra.mxu0 0.0
        %698 = vmatprep.subr.mxu0 0.0
        %699 = vmatpush1.msra.mxu0 0.0
        %700 = vmatprep.subr.mxu0 0.0
        %701 = vmatpush1.msra.mxu0 0.0
        %702 = vmatprep.subr.mxu0 0.0
        %703 = vmatpush1.msra.mxu0 0.0
        %704 = vmatprep.subr.mxu0 0.0
        %705 = vmatpush1.msra.mxu0 0.0
        %706 = vmatprep.subr.mxu0 0.0
        %707 = vmatpush1.msra.mxu0 0.0
        %708 = vmatprep.subr.mxu0 0.0
        %709 = vmatpush1.msra.mxu0 0.0
        %710 = vmatprep.subr.mxu0 0.0
        %711 = vmatpush1.msra.mxu0 0.0
        %712 = vmatprep.subr.mxu0 0.0
        %713 = vmatpush1.msra.mxu0 0.0
        %714 = vmatprep.subr.mxu0 0.0
        %715 = vmatpush1.msra.mxu0 0.0
        %716 = vmatprep.mubr.f32.mxu0 0.0
        %717 = vmatmul.mubr.f32.gmra.mrb[0].mxu0 %v510
        %v718 = vpop.f32.mrb[0].mxu0
        %v719 = vadd.f32 %v499, %v718
        %v720 = vpop.f32.mrb[0].mxu0
        %721 = vdwg.mxu0
        %722 = vmatprep.subr.mxu0 0.0
        %723 = vmatpush1.msra.mxu0 %v476
        %724 = vmatprep.subr.mxu0 0.0
        %725 = vmatpush1.msra.mxu0 %v477
        %726 = vmatprep.subr.mxu0 0.0
        %727 = vmatpush1.msra.mxu0 %v478
        %728 = vmatprep.subr.mxu0 0.0
        %729 = vmatpush1.msra.mxu0 %v479
        %730 = vmatprep.subr.mxu0 0.0
        %731 = vmatpush1.msra.mxu0 0.0
        %732 = vmatprep.subr.mxu0 0.0
        %733 = vmatpush1.msra.mxu0 0.0
        %734 = vmatprep.subr.mxu0 0.0
        %735 = vmatpush1.msra.mxu0 0.0
        %736 = vmatprep.subr.mxu0 0.0
        %737 = vmatpush1.msra.mxu0 0.0
        %738 = vmatprep.subr.mxu0 0.0
        %739 = vmatpush1.msra.mxu0 0.0
        %740 = vmatprep.subr.mxu0 0.0
        %741 = vmatpush1.msra.mxu0 0.0
        %742 = vmatprep.subr.mxu0 0.0
        %743 = vmatpush1.msra.mxu0 0.0
        %744 = vmatprep.subr.mxu0 0.0
        %745 = vmatpush1.msra.mxu0 0.0
        %746 = vmatprep.subr.mxu0 0.0
        %747 = vmatpush1.msra.mxu0 0.0
        %748 = vmatprep.subr.mxu0 0.0
        %749 = vmatpush1.msra.mxu0 0.0
        %750 = vmatprep.subr.mxu0 0.0
        %751 = vmatpush1.msra.mxu0 0.0
        %752 = vmatprep.subr.mxu0 0.0
        %753 = vmatpush1.msra.mxu0 0.0
        %754 = vmatprep.subr.mxu0 0.0
        %755 = vmatpush1.msra.mxu0 0.0
        %756 = vmatprep.subr.mxu0 0.0
        %757 = vmatpush1.msra.mxu0 0.0
        %758 = vmatprep.subr.mxu0 0.0
        %759 = vmatpush1.msra.mxu0 0.0
        %760 = vmatprep.subr.mxu0 0.0
        %761 = vmatpush1.msra.mxu0 0.0
        %762 = vmatprep.subr.mxu0 0.0
        %763 = vmatpush1.msra.mxu0 0.0
        %764 = vmatprep.subr.mxu0 0.0
        %765 = vmatpush1.msra.mxu0 0.0
        %766 = vmatprep.subr.mxu0 0.0
        %767 = vmatpush1.msra.mxu0 0.0
        %768 = vmatprep.subr.mxu0 0.0
        %769 = vmatpush1.msra.mxu0 0.0
        %770 = vmatprep.subr.mxu0 0.0
        %771 = vmatpush1.msra.mxu0 0.0
        %772 = vmatprep.subr.mxu0 0.0
        %773 = vmatpush1.msra.mxu0 0.0
        %774 = vmatprep.subr.mxu0 0.0
        %775 = vmatpush1.msra.mxu0 0.0
        %776 = vmatprep.subr.mxu0 0.0
        %777 = vmatpush1.msra.mxu0 0.0
        %778 = vmatprep.subr.mxu0 0.0
        %779 = vmatpush1.msra.mxu0 0.0
        %780 = vmatprep.subr.mxu0 0.0
        %781 = vmatpush1.msra.mxu0 0.0
        %782 = vmatprep.subr.mxu0 0.0
        %783 = vmatpush1.msra.mxu0 0.0
        %784 = vmatprep.subr.mxu0 0.0
        %785 = vmatpush1.msra.mxu0 0.0
        %786 = vmatprep.mubr.f32.mxu0 0.0
        %787 = vmatmul.mubr.f32.gmra.mrb[0].mxu0 %v510
        %v788 = vpop.f32.mrb[0].mxu0
        %v789 = vadd.f32 %v503, %v788
        %v790 = vpop.f32.mrb[0].mxu0
        %791 = vdwg.mxu0
        %v792 = vld [vmem:[%s3] sm:$0x1]
        %v793 = vld [vmem:[%s4] sm:$0x1]
        %vm794 = vcmask 64512
        %v795 = vsel %vm794, %v579, 0.0
        %796 = vadd.xlane.f32.xlu0 %v795
        %v797 = vpop.xlane.xlu0 %796
        %v798 = vsel %vm794, %v649, 0.0
        %799 = vadd.xlane.f32.xlu0 %v798
        %v800 = vpop.xlane.xlu0 %799
        %v801 = vsel %vm794, %v719, 0.0
        %802 = vadd.xlane.f32.xlu0 %v801
        %v803 = vpop.xlane.xlu0 %802
        %v804 = vsel %vm794, %v789, 0.0
        %805 = vadd.xlane.f32.xlu0 %v804
        %v806 = vpop.xlane.xlu0 %805
        %v807 = vrcp.pop 8.0
        %v808 = vmul.f32 %v797, %v807
        %v809 = vmul.f32 %v800, %v807
        %v810 = vmul.f32 %v803, %v807
        %v811 = vmul.f32 %v806, %v807
        %v812 = vsub.f32 %v579, %v808
        %v813 = vsub.f32 %v649, %v809
        %v814 = vsub.f32 %v719, %v810
        %v815 = vsub.f32 %v789, %v811
        %v816 = vmul.f32 %v812, %v812
        %v817 = vmul.f32 %v813, %v813
        %v818 = vmul.f32 %v814, %v814
        %v819 = vmul.f32 %v815, %v815
        %v820 = vsel %vm794, %v816, 0.0
        %821 = vadd.xlane.f32.xlu0 %v820
        %v822 = vpop.xlane.xlu0 %821
        %v823 = vsel %vm794, %v817, 0.0
        %824 = vadd.xlane.f32.xlu0 %v823
        %v825 = vpop.xlane.xlu0 %824
        %v826 = vsel %vm794, %v818, 0.0
        %827 = vadd.xlane.f32.xlu0 %v826
        %v828 = vpop.xlane.xlu0 %827
        %v829 = vsel %vm794, %v819, 0.0
        %830 = vadd.xlane.f32.xlu0 %v829
        %v831 = vpop.xlane.xlu0 %830
        %v832 = vmul.f32 %v822, %v807
        %v833 = vmul.f32 %v825, %v807
        %v834 = vmul.f32 %v828, %v807
        %v835 = vmul.f32 %v831, %v807
        %v836 = vadd.f32 %v832, 1e-05
        %v837 = vadd.f32 %v833, 1e-05
        %v838 = vadd.f32 %v834, 1e-05
        %v839 = vadd.f32 %v835, 1e-05
        %v840 = vrsqrt.pop %v836
        %v841 = vrsqrt.pop %v837
        %v842 = vrsqrt.pop %v838
        %v843 = vrsqrt.pop %v839
        %v844 = vmul.f32 %v812, %v840
        %v845 = vmul.f32 %v813, %v841
        %v846 = vmul.f32 %v814, %v842
        %v847 = vmul.f32 %v815, %v843
        %v849 = vlaneseq
        %v850 = vshrl.u32 %v849, 7
        %v851 = vsub.s32 0, %v850
        %v852 = vrot.slane %v792, %v851
        %v854 = vmul.f32 %v844, %v852
        %v855 = vmul.f32 %v845, %v852
        %v856 = vmul.f32 %v846, %v852
        %v857 = vmul.f32 %v847, %v852
        %v859 = vlaneseq
        %v860 = vshrl.u32 %v859, 7
        %v861 = vsub.s32 0, %v860
        %v862 = vrot.slane %v793, %v861
        %v864 = vadd.f32 %v854, %v862
        %v865 = vadd.f32 %v855, %v862
        %v866 = vadd.f32 %v856, %v862
        %v867 = vadd.f32 %v857, %v862
        %v868 = vld [vmem:[%s5] sm:$0x1]
        %v869 = vld [vmem:[%s6] sm:$0x1]
        %874 = vrot.lane.b32.xlu0 %v579, 120
        %v875 = vpop.permute.xlu0 %874
        %876 = vrot.lane.b32.xlu0 %v649, 120
        %v877 = vpop.permute.xlu0 %876
        %878 = vrot.lane.b32.xlu0 %v719, 120
        %v879 = vpop.permute.xlu0 %878
        %880 = vrot.lane.b32.xlu0 %v789, 120
        %v881 = vpop.permute.xlu0 %880
        %v886 = vsel %vm794, %v875, 0.0
        %887 = vadd.xlane.f32.xlu0 %v886
        %v888 = vpop.xlane.xlu0 %887
        %v889 = vsel %vm794, %v877, 0.0
        %890 = vadd.xlane.f32.xlu0 %v889
        %v891 = vpop.xlane.xlu0 %890
        %v892 = vsel %vm794, %v879, 0.0
        %893 = vadd.xlane.f32.xlu0 %v892
        %v894 = vpop.xlane.xlu0 %893
        %v895 = vsel %vm794, %v881, 0.0
        %896 = vadd.xlane.f32.xlu0 %v895
        %v897 = vpop.xlane.xlu0 %896
        %v898 = vmul.f32 %v888, %v807
        %v899 = vmul.f32 %v891, %v807
        %v900 = vmul.f32 %v894, %v807
        %v901 = vmul.f32 %v897, %v807
        %v902 = vsub.f32 %v579, %v898
        %v903 = vsub.f32 %v649, %v899
        %v904 = vsub.f32 %v719, %v900
        %v905 = vsub.f32 %v789, %v901
        %v906 = vmul.f32 %v902, %v902
        %v907 = vmul.f32 %v903, %v903
        %v908 = vmul.f32 %v904, %v904
        %v909 = vmul.f32 %v905, %v905
        %914 = vrot.lane.b32.xlu0 %v906, 120
        %v915 = vpop.permute.xlu0 %914
        %916 = vrot.lane.b32.xlu0 %v907, 120
        %v917 = vpop.permute.xlu0 %916
        %918 = vrot.lane.b32.xlu0 %v908, 120
        %v919 = vpop.permute.xlu0 %918
        %920 = vrot.lane.b32.xlu0 %v909, 120
        %v921 = vpop.permute.xlu0 %920
        %v926 = vsel %vm794, %v915, 0.0
        %927 = vadd.xlane.f32.xlu0 %v926
        %v928 = vpop.xlane.xlu0 %927
        %v929 = vsel %vm794, %v917, 0.0
        %930 = vadd.xlane.f32.xlu0 %v929
        %v931 = vpop.xlane.xlu0 %930
        %v932 = vsel %vm794, %v919, 0.0
        %933 = vadd.xlane.f32.xlu0 %v932
        %v934 = vpop.xlane.xlu0 %933
        %v935 = vsel %vm794, %v921, 0.0
        %936 = vadd.xlane.f32.xlu0 %v935
        %v937 = vpop.xlane.xlu0 %936
        %v938 = vmul.f32 %v928, %v807
        %v939 = vmul.f32 %v931, %v807
        %v940 = vmul.f32 %v934, %v807
        %v941 = vmul.f32 %v937, %v807
        %v942 = vadd.f32 %v938, 1e-05
        %v943 = vadd.f32 %v939, 1e-05
        %v944 = vadd.f32 %v940, 1e-05
        %v945 = vadd.f32 %v941, 1e-05
        %v946 = vrsqrt.pop %v942
        %v947 = vrsqrt.pop %v943
        %v948 = vrsqrt.pop %v944
        %v949 = vrsqrt.pop %v945
        %v950 = vmul.f32 %v902, %v946
        %v951 = vmul.f32 %v903, %v947
        %v952 = vmul.f32 %v904, %v948
        %v953 = vmul.f32 %v905, %v949
        %v955 = vlaneseq
        %v956 = vshrl.u32 %v955, 7
        %v957 = vsub.s32 0, %v956
        %v958 = vrot.slane %v868, %v957
        %959 = vrot.lane.b32.xlu0 %v958, 8
        %v960 = vpop.permute.xlu0 %959
        %v962 = vmul.f32 %v950, %v960
        %v963 = vmul.f32 %v951, %v960
        %v964 = vmul.f32 %v952, %v960
        %v965 = vmul.f32 %v953, %v960
        %v967 = vlaneseq
        %v968 = vshrl.u32 %v967, 7
        %v969 = vsub.s32 0, %v968
        %v970 = vrot.slane %v869, %v969
        %971 = vrot.lane.b32.xlu0 %v970, 8
        %v972 = vpop.permute.xlu0 %971
        %v974 = vadd.f32 %v962, %v972
        %v975 = vadd.f32 %v963, %v972
        %v976 = vadd.f32 %v964, %v972
        %v977 = vadd.f32 %v965, %v972
        %979 = vrot.lane.b32.xlu0 %v974, 120
        %v980 = vpop.permute.xlu0 %979
        %v982 = vsel %vm794, %v864, 0
        %v984 = vsel %vm794, %v980, 0
        %986 = vmatprep.subr.mxu0 0.0
        %987 = vmatpush1.xpose.msra.mxu0 %v984
        %988 = vmatprep.subr.mxu0 0.0
        %989 = vmatpush1.xpose.msra.mxu0 0.0
        %990 = vmatprep.subr.mxu0 0.0
        %991 = vmatpush1.xpose.msra.mxu0 0.0
        %992 = vmatprep.subr.mxu0 0.0
        %993 = vmatpush1.xpose.msra.mxu0 0.0
        %994 = vmatprep.subr.mxu0 0.0
        %995 = vmatpush1.xpose.msra.mxu0 0.0
        %996 = vmatprep.subr.mxu0 0.0
        %997 = vmatpush1.xpose.msra.mxu0 0.0
        %998 = vmatprep.subr.mxu0 0.0
        %999 = vmatpush1.xpose.msra.mxu0 0.0
        %1000 = vmatprep.subr.mxu0 0.0
        %1001 = vmatpush1.xpose.msra.mxu0 0.0
        %1002 = vmatprep.subr.mxu0 0.0
        %1003 = vmatpush1.xpose.msra.mxu0 0.0
        %1004 = vmatprep.subr.mxu0 0.0
        %1005 = vmatpush1.xpose.msra.mxu0 0.0
        %1006 = vmatprep.subr.mxu0 0.0
        %1007 = vmatpush1.xpose.msra.mxu0 0.0
        %1008 = vmatprep.subr.mxu0 0.0
        %1009 = vmatpush1.xpose.msra.mxu0 0.0
        %1010 = vmatprep.subr.mxu0 0.0
        %1011 = vmatpush1.xpose.msra.mxu0 0.0
        %1012 = vmatprep.subr.mxu0 0.0
        %1013 = vmatpush1.xpose.msra.mxu0 0.0
        %1014 = vmatprep.subr.mxu0 0.0
        %1015 = vmatpush1.xpose.msra.mxu0 0.0
        %1016 = vmatprep.subr.mxu0 0.0
        %1017 = vmatpush1.xpose.msra.mxu0 0.0
        %1018 = vmatprep.subr.mxu0 0.0
        %1019 = vmatpush1.xpose.msra.mxu0 0.0
        %1020 = vmatprep.subr.mxu0 0.0
        %1021 = vmatpush1.xpose.msra.mxu0 0.0
        %1022 = vmatprep.subr.mxu0 0.0
        %1023 = vmatpush1.xpose.msra.mxu0 0.0
        %1024 = vmatprep.subr.mxu0 0.0
        %1025 = vmatpush1.xpose.msra.mxu0 0.0
        %1026 = vmatprep.subr.mxu0 0.0
        %1027 = vmatpush1.xpose.msra.mxu0 0.0
        %1028 = vmatprep.subr.mxu0 0.0
        %1029 = vmatpush1.xpose.msra.mxu0 0.0
        %1030 = vmatprep.subr.mxu0 0.0
        %1031 = vmatpush1.xpose.msra.mxu0 0.0
        %1032 = vmatprep.subr.mxu0 0.0
        %1033 = vmatpush1.xpose.msra.mxu0 0.0
        %1034 = vmatprep.subr.mxu0 0.0
        %1035 = vmatpush1.xpose.msra.mxu0 0.0
        %1036 = vmatprep.subr.mxu0 0.0
        %1037 = vmatpush1.xpose.msra.mxu0 0.0
        %1038 = vmatprep.subr.mxu0 0.0
        %1039 = vmatpush1.xpose.msra.mxu0 0.0
        %1040 = vmatprep.subr.mxu0 0.0
        %1041 = vmatpush1.xpose.msra.mxu0 0.0
        %1042 = vmatprep.subr.mxu0 0.0
        %1043 = vmatpush1.xpose.msra.mxu0 0.0
        %1044 = vmatprep.subr.mxu0 0.0
        %1045 = vmatpush1.xpose.msra.mxu0 0.0
        %1046 = vmatprep.subr.mxu0 0.0
        %1047 = vmatpush1.xpose.msra.mxu0 0.0
        %1048 = vmatprep.subr.mxu0 0.0
        %1049 = vmatpush1.xpose.msra.mxu0 0.0
        %1050 = vmatprep.mubr.f32.mxu0 0.0
        %1051 = vmatmul.mubr.f32.gmra.mrb[0].mxu0 %v982
        %v1052 = vpop.f32.mrb[0].mxu0
        %v1053 = vadd.f32 0.0, %v1052
        %v1054 = vpop.f32.mrb[0].mxu0
        %1055 = vdwg.mxu0
        %1057 = vrot.lane.b32.xlu0 %v975, 120
        %v1058 = vpop.permute.xlu0 %1057
        %v1060 = vsel %vm794, %v865, 0
        %v1062 = vsel %vm794, %v1058, 0
        %1064 = vmatprep.subr.mxu0 0.0
        %1065 = vmatpush1.xpose.msra.mxu0 %v1062
        %1066 = vmatprep.subr.mxu0 0.0
        %1067 = vmatpush1.xpose.msra.mxu0 0.0
        %1068 = vmatprep.subr.mxu0 0.0
        %1069 = vmatpush1.xpose.msra.mxu0 0.0
        %1070 = vmatprep.subr.mxu0 0.0
        %1071 = vmatpush1.xpose.msra.mxu0 0.0
        %1072 = vmatprep.subr.mxu0 0.0
        %1073 = vmatpush1.xpose.msra.mxu0 0.0
        %1074 = vmatprep.subr.mxu0 0.0
        %1075 = vmatpush1.xpose.msra.mxu0 0.0
        %1076 = vmatprep.subr.mxu0 0.0
        %1077 = vmatpush1.xpose.msra.mxu0 0.0
        %1078 = vmatprep.subr.mxu0 0.0
        %1079 = vmatpush1.xpose.msra.mxu0 0.0
        %1080 = vmatprep.subr.mxu0 0.0
        %1081 = vmatpush1.xpose.msra.mxu0 0.0
        %1082 = vmatprep.subr.mxu0 0.0
        %1083 = vmatpush1.xpose.msra.mxu0 0.0
        %1084 = vmatprep.subr.mxu0 0.0
        %1085 = vmatpush1.xpose.msra.mxu0 0.0
        %1086 = vmatprep.subr.mxu0 0.0
        %1087 = vmatpush1.xpose.msra.mxu0 0.0
        %1088 = vmatprep.subr.mxu0 0.0
        %1089 = vmatpush1.xpose.msra.mxu0 0.0
        %1090 = vmatprep.subr.mxu0 0.0
        %1091 = vmatpush1.xpose.msra.mxu0 0.0
        %1092 = vmatprep.subr.mxu0 0.0
        %1093 = vmatpush1.xpose.msra.mxu0 0.0
        %1094 = vmatprep.subr.mxu0 0.0
        %1095 = vmatpush1.xpose.msra.mxu0 0.0
        %1096 = vmatprep.subr.mxu0 0.0
        %1097 = vmatpush1.xpose.msra.mxu0 0.0
        %1098 = vmatprep.subr.mxu0 0.0
        %1099 = vmatpush1.xpose.msra.mxu0 0.0
        %1100 = vmatprep.subr.mxu0 0.0
        %1101 = vmatpush1.xpose.msra.mxu0 0.0
        %1102 = vmatprep.subr.mxu0 0.0
        %1103 = vmatpush1.xpose.msra.mxu0 0.0
        %1104 = vmatprep.subr.mxu0 0.0
        %1105 = vmatpush1.xpose.msra.mxu0 0.0
        %1106 = vmatprep.subr.mxu0 0.0
        %1107 = vmatpush1.xpose.msra.mxu0 0.0
        %1108 = vmatprep.subr.mxu0 0.0
        %1109 = vmatpush1.xpose.msra.mxu0 0.0
        %1110 = vmatprep.subr.mxu0 0.0
        %1111 = vmatpush1.xpose.msra.mxu0 0.0
        %1112 = vmatprep.subr.mxu0 0.0
        %1113 = vmatpush1.xpose.msra.mxu0 0.0
        %1114 = vmatprep.subr.mxu0 0.0
        %1115 = vmatpush1.xpose.msra.mxu0 0.0
        %1116 = vmatprep.subr.mxu0 0.0
        %1117 = vmatpush1.xpose.msra.mxu0 0.0
        %1118 = vmatprep.subr.mxu0 0.0
        %1119 = vmatpush1.xpose.msra.mxu0 0.0
        %1120 = vmatprep.subr.mxu0 0.0
        %1121 = vmatpush1.xpose.msra.mxu0 0.0
        %1122 = vmatprep.subr.mxu0 0.0
        %1123 = vmatpush1.xpose.msra.mxu0 0.0
        %1124 = vmatprep.subr.mxu0 0.0
        %1125 = vmatpush1.xpose.msra.mxu0 0.0
        %1126 = vmatprep.subr.mxu0 0.0
        %1127 = vmatpush1.xpose.msra.mxu0 0.0
        %1128 = vmatprep.mubr.f32.mxu0 0.0
        %1129 = vmatmul.mubr.f32.gmra.mrb[0].mxu0 %v1060
        %v1130 = vpop.f32.mrb[0].mxu0
        %v1131 = vadd.f32 0.0, %v1130
        %v1132 = vpop.f32.mrb[0].mxu0
        %1133 = vdwg.mxu0
        %1135 = vrot.lane.b32.xlu0 %v976, 120
        %v1136 = vpop.permute.xlu0 %1135
        %v1138 = vsel %vm794, %v866, 0
        %v1140 = vsel %vm794, %v1136, 0
        %1142 = vmatprep.subr.mxu0 0.0
        %1143 = vmatpush1.xpose.msra.mxu0 %v1140
        %1144 = vmatprep.subr.mxu0 0.0
        %1145 = vmatpush1.xpose.msra.mxu0 0.0
        %1146 = vmatprep.subr.mxu0 0.0
        %1147 = vmatpush1.xpose.msra.mxu0 0.0
        %1148 = vmatprep.subr.mxu0 0.0
        %1149 = vmatpush1.xpose.msra.mxu0 0.0
        %1150 = vmatprep.subr.mxu0 0.0
        %1151 = vmatpush1.xpose.msra.mxu0 0.0
        %1152 = vmatprep.subr.mxu0 0.0
        %1153 = vmatpush1.xpose.msra.mxu0 0.0
        %1154 = vmatprep.subr.mxu0 0.0
        %1155 = vmatpush1.xpose.msra.mxu0 0.0
        %1156 = vmatprep.subr.mxu0 0.0
        %1157 = vmatpush1.xpose.msra.mxu0 0.0
        %1158 = vmatprep.subr.mxu0 0.0
        %1159 = vmatpush1.xpose.msra.mxu0 0.0
        %1160 = vmatprep.subr.mxu0 0.0
        %1161 = vmatpush1.xpose.msra.mxu0 0.0
        %1162 = vmatprep.subr.mxu0 0.0
        %1163 = vmatpush1.xpose.msra.mxu0 0.0
        %1164 = vmatprep.subr.mxu0 0.0
        %1165 = vmatpush1.xpose.msra.mxu0 0.0
        %1166 = vmatprep.subr.mxu0 0.0
        %1167 = vmatpush1.xpose.msra.mxu0 0.0
        %1168 = vmatprep.subr.mxu0 0.0
        %1169 = vmatpush1.xpose.msra.mxu0 0.0
        %1170 = vmatprep.subr.mxu0 0.0
        %1171 = vmatpush1.xpose.msra.mxu0 0.0
        %1172 = vmatprep.subr.mxu0 0.0
        %1173 = vmatpush1.xpose.msra.mxu0 0.0
        %1174 = vmatprep.subr.mxu0 0.0
        %1175 = vmatpush1.xpose.msra.mxu0 0.0
        %1176 = vmatprep.subr.mxu0 0.0
        %1177 = vmatpush1.xpose.msra.mxu0 0.0
        %1178 = vmatprep.subr.mxu0 0.0
        %1179 = vmatpush1.xpose.msra.mxu0 0.0
        %1180 = vmatprep.subr.mxu0 0.0
        %1181 = vmatpush1.xpose.msra.mxu0 0.0
        %1182 = vmatprep.subr.mxu0 0.0
        %1183 = vmatpush1.xpose.msra.mxu0 0.0
        %1184 = vmatprep.subr.mxu0 0.0
        %1185 = vmatpush1.xpose.msra.mxu0 0.0
        %1186 = vmatprep.subr.mxu0 0.0
        %1187 = vmatpush1.xpose.msra.mxu0 0.0
        %1188 = vmatprep.subr.mxu0 0.0
        %1189 = vmatpush1.xpose.msra.mxu0 0.0
        %1190 = vmatprep.subr.mxu0 0.0
        %1191 = vmatpush1.xpose.msra.mxu0 0.0
        %1192 = vmatprep.subr.mxu0 0.0
        %1193 = vmatpush1.xpose.msra.mxu0 0.0
        %1194 = vmatprep.subr.mxu0 0.0
        %1195 = vmatpush1.xpose.msra.mxu0 0.0
        %1196 = vmatprep.subr.mxu0 0.0
        %1197 = vmatpush1.xpose.msra.mxu0 0.0
        %1198 = vmatprep.subr.mxu0 0.0
        %1199 = vmatpush1.xpose.msra.mxu0 0.0
        %1200 = vmatprep.subr.mxu0 0.0
        %1201 = vmatpush1.xpose.msra.mxu0 0.0
        %1202 = vmatprep.subr.mxu0 0.0
        %1203 = vmatpush1.xpose.msra.mxu0 0.0
        %1204 = vmatprep.subr.mxu0 0.0
        %1205 = vmatpush1.xpose.msra.mxu0 0.0
        %1206 = vmatprep.mubr.f32.mxu0 0.0
        %1207 = vmatmul.mubr.f32.gmra.mrb[0].mxu0 %v1138
        %v1208 = vpop.f32.mrb[0].mxu0
        %v1209 = vadd.f32 0.0, %v1208
        %v1210 = vpop.f32.mrb[0].mxu0
        %1211 = vdwg.mxu0
        %1213 = vrot.lane.b32.xlu0 %v977, 120
        %v1214 = vpop.permute.xlu0 %1213
        %v1216 = vsel %vm794, %v867, 0
        %v1218 = vsel %vm794, %v1214, 0
        %1220 = vmatprep.subr.mxu0 0.0
        %1221 = vmatpush1.xpose.msra.mxu0 %v1218
        %1222 = vmatprep.subr.mxu0 0.0
        %1223 = vmatpush1.xpose.msra.mxu0 0.0
        %1224 = vmatprep.subr.mxu0 0.0
        %1225 = vmatpush1.xpose.msra.mxu0 0.0
        %1226 = vmatprep.subr.mxu0 0.0
        %1227 = vmatpush1.xpose.msra.mxu0 0.0
        %1228 = vmatprep.subr.mxu0 0.0
        %1229 = vmatpush1.xpose.msra.mxu0 0.0
        %1230 = vmatprep.subr.mxu0 0.0
        %1231 = vmatpush1.xpose.msra.mxu0 0.0
        %1232 = vmatprep.subr.mxu0 0.0
        %1233 = vmatpush1.xpose.msra.mxu0 0.0
        %1234 = vmatprep.subr.mxu0 0.0
        %1235 = vmatpush1.xpose.msra.mxu0 0.0
        %1236 = vmatprep.subr.mxu0 0.0
        %1237 = vmatpush1.xpose.msra.mxu0 0.0
        %1238 = vmatprep.subr.mxu0 0.0
        %1239 = vmatpush1.xpose.msra.mxu0 0.0
        %1240 = vmatprep.subr.mxu0 0.0
        %1241 = vmatpush1.xpose.msra.mxu0 0.0
        %1242 = vmatprep.subr.mxu0 0.0
        %1243 = vmatpush1.xpose.msra.mxu0 0.0
        %1244 = vmatprep.subr.mxu0 0.0
        %1245 = vmatpush1.xpose.msra.mxu0 0.0
        %1246 = vmatprep.subr.mxu0 0.0
        %1247 = vmatpush1.xpose.msra.mxu0 0.0
        %1248 = vmatprep.subr.mxu0 0.0
        %1249 = vmatpush1.xpose.msra.mxu0 0.0
        %1250 = vmatprep.subr.mxu0 0.0
        %1251 = vmatpush1.xpose.msra.mxu0 0.0
        %1252 = vmatprep.subr.mxu0 0.0
        %1253 = vmatpush1.xpose.msra.mxu0 0.0
        %1254 = vmatprep.subr.mxu0 0.0
        %1255 = vmatpush1.xpose.msra.mxu0 0.0
        %1256 = vmatprep.subr.mxu0 0.0
        %1257 = vmatpush1.xpose.msra.mxu0 0.0
        %1258 = vmatprep.subr.mxu0 0.0
        %1259 = vmatpush1.xpose.msra.mxu0 0.0
        %1260 = vmatprep.subr.mxu0 0.0
        %1261 = vmatpush1.xpose.msra.mxu0 0.0
        %1262 = vmatprep.subr.mxu0 0.0
        %1263 = vmatpush1.xpose.msra.mxu0 0.0
        %1264 = vmatprep.subr.mxu0 0.0
        %1265 = vmatpush1.xpose.msra.mxu0 0.0
        %1266 = vmatprep.subr.mxu0 0.0
        %1267 = vmatpush1.xpose.msra.mxu0 0.0
        %1268 = vmatprep.subr.mxu0 0.0
        %1269 = vmatpush1.xpose.msra.mxu0 0.0
        %1270 = vmatprep.subr.mxu0 0.0
        %1271 = vmatpush1.xpose.msra.mxu0 0.0
        %1272 = vmatprep.subr.mxu0 0.0
        %1273 = vmatpush1.xpose.msra.mxu0 0.0
        %1274 = vmatprep.subr.mxu0 0.0
        %1275 = vmatpush1.xpose.msra.mxu0 0.0
        %1276 = vmatprep.subr.mxu0 0.0
        %1277 = vmatpush1.xpose.msra.mxu0 0.0
        %1278 = vmatprep.subr.mxu0 0.0
        %1279 = vmatpush1.xpose.msra.mxu0 0.0
        %1280 = vmatprep.subr.mxu0 0.0
        %1281 = vmatpush1.xpose.msra.mxu0 0.0
        %1282 = vmatprep.subr.mxu0 0.0
        %1283 = vmatpush1.xpose.msra.mxu0 0.0
        %1284 = vmatprep.mubr.f32.mxu0 0.0
        %1285 = vmatmul.mubr.f32.gmra.mrb[0].mxu0 %v1216
        %v1286 = vpop.f32.mrb[0].mxu0
        %v1287 = vadd.f32 0.0, %v1286
        %v1288 = vpop.f32.mrb[0].mxu0
        %1289 = vdwg.mxu0
        %v1290 = vsel %vm794, %v1053, -inf
        %1291 = vmax.xlane.f32.xlu0 %v1290
        %v1292 = vpop.xlane.xlu0 %1291
        %v1293 = vsel %vm794, %v1131, -inf
        %1294 = vmax.xlane.f32.xlu0 %v1293
        %v1295 = vpop.xlane.xlu0 %1294
        %v1296 = vsel %vm794, %v1209, -inf
        %1297 = vmax.xlane.f32.xlu0 %v1296
        %v1298 = vpop.xlane.xlu0 %1297
        %v1299 = vsel %vm794, %v1287, -inf
        %1300 = vmax.xlane.f32.xlu0 %v1299
        %v1301 = vpop.xlane.xlu0 %1300
        %v1302 = vsub.f32 %v1053, %v1292
        %v1303 = vsub.f32 %v1131, %v1295
        %v1304 = vsub.f32 %v1209, %v1298
        %v1305 = vsub.f32 %v1287, %v1301
        %v1306 = vmul.f32 %v1302, 1.442695
        %v1307 = vpow.pop %v1306
        %v1308 = vmul.f32 %v1303, 1.442695
        %v1309 = vpow.pop %v1308
        %v1310 = vmul.f32 %v1304, 1.442695
        %v1311 = vpow.pop %v1310
        %v1312 = vmul.f32 %v1305, 1.442695
        %v1313 = vpow.pop %v1312
        %v1314 = vsel %vm794, %v1307, 0.0
        %1315 = vadd.xlane.f32.xlu0 %v1314
        %v1316 = vpop.xlane.xlu0 %1315
        %v1317 = vsel %vm794, %v1309, 0.0
        %1318 = vadd.xlane.f32.xlu0 %v1317
        %v1319 = vpop.xlane.xlu0 %1318
        %v1320 = vsel %vm794, %v1311, 0.0
        %1321 = vadd.xlane.f32.xlu0 %v1320
        %v1322 = vpop.xlane.xlu0 %1321
        %v1323 = vsel %vm794, %v1313, 0.0
        %1324 = vadd.xlane.f32.xlu0 %v1323
        %v1325 = vpop.xlane.xlu0 %1324
        %v1326 = vrcp.pop %v1316
        %v1327 = vrcp.pop %v1319
        %v1328 = vrcp.pop %v1322
        %v1329 = vrcp.pop %v1325
        %v1330 = vmul.f32 %v1307, %v1326
        %v1331 = vmul.f32 %v1309, %v1327
        %v1332 = vmul.f32 %v1311, %v1328
        %v1333 = vmul.f32 %v1313, %v1329
        %1334 = vrot.lane.b32.xlu0 %v579, 112
        %v1335 = vpop.permute.xlu0 %1334
        %v1338 = vsel %vm794, %v1330, 0
        %1340 = vmatprep.subr.mxu0 0.0
        %1341 = vmatpush1.msra.mxu0 %v1335
        %1342 = vmatprep.subr.mxu0 0.0
        %1343 = vmatpush1.msra.mxu0 0.0
        %1344 = vmatprep.subr.mxu0 0.0
        %1345 = vmatpush1.msra.mxu0 0.0
        %1346 = vmatprep.subr.mxu0 0.0
        %1347 = vmatpush1.msra.mxu0 0.0
        %1348 = vmatprep.subr.mxu0 0.0
        %1349 = vmatpush1.msra.mxu0 0.0
        %1350 = vmatprep.subr.mxu0 0.0
        %1351 = vmatpush1.msra.mxu0 0.0
        %1352 = vmatprep.subr.mxu0 0.0
        %1353 = vmatpush1.msra.mxu0 0.0
        %1354 = vmatprep.subr.mxu0 0.0
        %1355 = vmatpush1.msra.mxu0 0.0
        %1356 = vmatprep.subr.mxu0 0.0
        %1357 = vmatpush1.msra.mxu0 0.0
        %1358 = vmatprep.subr.mxu0 0.0
        %1359 = vmatpush1.msra.mxu0 0.0
        %1360 = vmatprep.subr.mxu0 0.0
        %1361 = vmatpush1.msra.mxu0 0.0
        %1362 = vmatprep.subr.mxu0 0.0
        %1363 = vmatpush1.msra.mxu0 0.0
        %1364 = vmatprep.subr.mxu0 0.0
        %1365 = vmatpush1.msra.mxu0 0.0
        %1366 = vmatprep.subr.mxu0 0.0
        %1367 = vmatpush1.msra.mxu0 0.0
        %1368 = vmatprep.subr.mxu0 0.0
        %1369 = vmatpush1.msra.mxu0 0.0
        %1370 = vmatprep.subr.mxu0 0.0
        %1371 = vmatpush1.msra.mxu0 0.0
        %1372 = vmatprep.subr.mxu0 0.0
        %1373 = vmatpush1.msra.mxu0 0.0
        %1374 = vmatprep.subr.mxu0 0.0
        %1375 = vmatpush1.msra.mxu0 0.0
        %1376 = vmatprep.subr.mxu0 0.0
        %1377 = vmatpush1.msra.mxu0 0.0
        %1378 = vmatprep.subr.mxu0 0.0
        %1379 = vmatpush1.msra.mxu0 0.0
        %1380 = vmatprep.subr.mxu0 0.0
        %1381 = vmatpush1.msra.mxu0 0.0
        %1382 = vmatprep.subr.mxu0 0.0
        %1383 = vmatpush1.msra.mxu0 0.0
        %1384 = vmatprep.subr.mxu0 0.0
        %1385 = vmatpush1.msra.mxu0 0.0
        %1386 = vmatprep.subr.mxu0 0.0
        %1387 = vmatpush1.msra.mxu0 0.0
        %1388 = vmatprep.subr.mxu0 0.0
        %1389 = vmatpush1.msra.mxu0 0.0
        %1390 = vmatprep.subr.mxu0 0.0
        %1391 = vmatpush1.msra.mxu0 0.0
        %1392 = vmatprep.subr.mxu0 0.0
        %1393 = vmatpush1.msra.mxu0 0.0
        %1394 = vmatprep.subr.mxu0 0.0
        %1395 = vmatpush1.msra.mxu0 0.0
        %1396 = vmatprep.subr.mxu0 0.0
        %1397 = vmatpush1.msra.mxu0 0.0
        %1398 = vmatprep.subr.mxu0 0.0
        %1399 = vmatpush1.msra.mxu0 0.0
        %1400 = vmatprep.subr.mxu0 0.0
        %1401 = vmatpush1.msra.mxu0 0.0
        %1402 = vmatprep.subr.mxu0 0.0
        %1403 = vmatpush1.msra.mxu0 0.0
        %1404 = vmatprep.mubr.f32.mxu0 0.0
        %1405 = vmatmul.mubr.f32.gmra.mrb[0].mxu0 %v1338
        %v1406 = vpop.f32.mrb[0].mxu0
        %v1407 = vadd.f32 0.0, %v1406
        %v1408 = vpop.f32.mrb[0].mxu0
        %1409 = vdwg.mxu0
        %1410 = vrot.lane.b32.xlu0 %v649, 112
        %v1411 = vpop.permute.xlu0 %1410
        %v1414 = vsel %vm794, %v1331, 0
        %1416 = vmatprep.subr.mxu0 0.0
        %1417 = vmatpush1.msra.mxu0 %v1411
        %1418 = vmatprep.subr.mxu0 0.0
        %1419 = vmatpush1.msra.mxu0 0.0
        %1420 = vmatprep.subr.mxu0 0.0
        %1421 = vmatpush1.msra.mxu0 0.0
        %1422 = vmatprep.subr.mxu0 0.0
        %1423 = vmatpush1.msra.mxu0 0.0
        %1424 = vmatprep.subr.mxu0 0.0
        %1425 = vmatpush1.msra.mxu0 0.0
        %1426 = vmatprep.subr.mxu0 0.0
        %1427 = vmatpush1.msra.mxu0 0.0
        %1428 = vmatprep.subr.mxu0 0.0
        %1429 = vmatpush1.msra.mxu0 0.0
        %1430 = vmatprep.subr.mxu0 0.0
        %1431 = vmatpush1.msra.mxu0 0.0
        %1432 = vmatprep.subr.mxu0 0.0
        %1433 = vmatpush1.msra.mxu0 0.0
        %1434 = vmatprep.subr.mxu0 0.0
        %1435 = vmatpush1.msra.mxu0 0.0
        %1436 = vmatprep.subr.mxu0 0.0
        %1437 = vmatpush1.msra.mxu0 0.0
        %1438 = vmatprep.subr.mxu0 0.0
        %1439 = vmatpush1.msra.mxu0 0.0
        %1440 = vmatprep.subr.mxu0 0.0
        %1441 = vmatpush1.msra.mxu0 0.0
        %1442 = vmatprep.subr.mxu0 0.0
        %1443 = vmatpush1.msra.mxu0 0.0
        %1444 = vmatprep.subr.mxu0 0.0
        %1445 = vmatpush1.msra.mxu0 0.0
        %1446 = vmatprep.subr.mxu0 0.0
        %1447 = vmatpush1.msra.mxu0 0.0
        %1448 = vmatprep.subr.mxu0 0.0
        %1449 = vmatpush1.msra.mxu0 0.0
        %1450 = vmatprep.subr.mxu0 0.0
        %1451 = vmatpush1.msra.mxu0 0.0
        %1452 = vmatprep.subr.mxu0 0.0
        %1453 = vmatpush1.msra.mxu0 0.0
        %1454 = vmatprep.subr.mxu0 0.0
        %1455 = vmatpush1.msra.mxu0 0.0
        %1456 = vmatprep.subr.mxu0 0.0
        %1457 = vmatpush1.msra.mxu0 0.0
        %1458 = vmatprep.subr.mxu0 0.0
        %1459 = vmatpush1.msra.mxu0 0.0
        %1460 = vmatprep.subr.mxu0 0.0
        %1461 = vmatpush1.msra.mxu0 0.0
        %1462 = vmatprep.subr.mxu0 0.0
        %1463 = vmatpush1.msra.mxu0 0.0
        %1464 = vmatprep.subr.mxu0 0.0
        %1465 = vmatpush1.msra.mxu0 0.0
        %1466 = vmatprep.subr.mxu0 0.0
        %1467 = vmatpush1.msra.mxu0 0.0
        %1468 = vmatprep.subr.mxu0 0.0
        %1469 = vmatpush1.msra.mxu0 0.0
        %1470 = vmatprep.subr.mxu0 0.0
        %1471 = vmatpush1.msra.mxu0 0.0
        %1472 = vmatprep.subr.mxu0 0.0
        %1473 = vmatpush1.msra.mxu0 0.0
        %1474 = vmatprep.subr.mxu0 0.0
        %1475 = vmatpush1.msra.mxu0 0.0
        %1476 = vmatprep.subr.mxu0 0.0
        %1477 = vmatpush1.msra.mxu0 0.0
        %1478 = vmatprep.subr.mxu0 0.0
        %1479 = vmatpush1.msra.mxu0 0.0
        %1480 = vmatprep.mubr.f32.mxu0 0.0
        %1481 = vmatmul.mubr.f32.gmra.mrb[0].mxu0 %v1414
        %v1482 = vpop.f32.mrb[0].mxu0
        %v1483 = vadd.f32 0.0, %v1482
        %v1484 = vpop.f32.mrb[0].mxu0
        %1485 = vdwg.mxu0
        %1486 = vrot.lane.b32.xlu0 %v719, 112
        %v1487 = vpop.permute.xlu0 %1486
        %v1490 = vsel %vm794, %v1332, 0
        %1492 = vmatprep.subr.mxu0 0.0
        %1493 = vmatpush1.msra.mxu0 %v1487
        %1494 = vmatprep.subr.mxu0 0.0
        %1495 = vmatpush1.msra.mxu0 0.0
        %1496 = vmatprep.subr.mxu0 0.0
        %1497 = vmatpush1.msra.mxu0 0.0
        %1498 = vmatprep.subr.mxu0 0.0
        %1499 = vmatpush1.msra.mxu0 0.0
        %1500 = vmatprep.subr.mxu0 0.0
        %1501 = vmatpush1.msra.mxu0 0.0
        %1502 = vmatprep.subr.mxu0 0.0
        %1503 = vmatpush1.msra.mxu0 0.0
        %1504 = vmatprep.subr.mxu0 0.0
        %1505 = vmatpush1.msra.mxu0 0.0
        %1506 = vmatprep.subr.mxu0 0.0
        %1507 = vmatpush1.msra.mxu0 0.0
        %1508 = vmatprep.subr.mxu0 0.0
        %1509 = vmatpush1.msra.mxu0 0.0
        %1510 = vmatprep.subr.mxu0 0.0
        %1511 = vmatpush1.msra.mxu0 0.0
        %1512 = vmatprep.subr.mxu0 0.0
        %1513 = vmatpush1.msra.mxu0 0.0
        %1514 = vmatprep.subr.mxu0 0.0
        %1515 = vmatpush1.msra.mxu0 0.0
        %1516 = vmatprep.subr.mxu0 0.0
        %1517 = vmatpush1.msra.mxu0 0.0
        %1518 = vmatprep.subr.mxu0 0.0
        %1519 = vmatpush1.msra.mxu0 0.0
        %1520 = vmatprep.subr.mxu0 0.0
        %1521 = vmatpush1.msra.mxu0 0.0
        %1522 = vmatprep.subr.mxu0 0.0
        %1523 = vmatpush1.msra.mxu0 0.0
        %1524 = vmatprep.subr.mxu0 0.0
        %1525 = vmatpush1.msra.mxu0 0.0
        %1526 = vmatprep.subr.mxu0 0.0
        %1527 = vmatpush1.msra.mxu0 0.0
        %1528 = vmatprep.subr.mxu0 0.0
        %1529 = vmatpush1.msra.mxu0 0.0
        %1530 = vmatprep.subr.mxu0 0.0
        %1531 = vmatpush1.msra.mxu0 0.0
        %1532 = vmatprep.subr.mxu0 0.0
        %1533 = vmatpush1.msra.mxu0 0.0
        %1534 = vmatprep.subr.mxu0 0.0
        %1535 = vmatpush1.msra.mxu0 0.0
        %1536 = vmatprep.subr.mxu0 0.0
        %1537 = vmatpush1.msra.mxu0 0.0
        %1538 = vmatprep.subr.mxu0 0.0
        %1539 = vmatpush1.msra.mxu0 0.0
        %1540 = vmatprep.subr.mxu0 0.0
        %1541 = vmatpush1.msra.mxu0 0.0
        %1542 = vmatprep.subr.mxu0 0.0
        %1543 = vmatpush1.msra.mxu0 0.0
        %1544 = vmatprep.subr.mxu0 0.0
        %1545 = vmatpush1.msra.mxu0 0.0
        %1546 = vmatprep.subr.mxu0 0.0
        %1547 = vmatpush1.msra.mxu0 0.0
        %1548 = vmatprep.subr.mxu0 0.0
        %1549 = vmatpush1.msra.mxu0 0.0
        %1550 = vmatprep.subr.mxu0 0.0
        %1551 = vmatpush1.msra.mxu0 0.0
        %1552 = vmatprep.subr.mxu0 0.0
        %1553 = vmatpush1.msra.mxu0 0.0
        %1554 = vmatprep.subr.mxu0 0.0
        %1555 = vmatpush1.msra.mxu0 0.0
        %1556 = vmatprep.mubr.f32.mxu0 0.0
        %1557 = vmatmul.mubr.f32.gmra.mrb[0].mxu0 %v1490
        %v1558 = vpop.f32.mrb[0].mxu0
        %v1559 = vadd.f32 0.0, %v1558
        %v1560 = vpop.f32.mrb[0].mxu0
        %1561 = vdwg.mxu0
        %1562 = vrot.lane.b32.xlu0 %v789, 112
        %v1563 = vpop.permute.xlu0 %1562
        %v1566 = vsel %vm794, %v1333, 0
        %1568 = vmatprep.subr.mxu0 0.0
        %1569 = vmatpush1.msra.mxu0 %v1563
        %1570 = vmatprep.subr.mxu0 0.0
        %1571 = vmatpush1.msra.mxu0 0.0
        %1572 = vmatprep.subr.mxu0 0.0
        %1573 = vmatpush1.msra.mxu0 0.0
        %1574 = vmatprep.subr.mxu0 0.0
        %1575 = vmatpush1.msra.mxu0 0.0
        %1576 = vmatprep.subr.mxu0 0.0
        %1577 = vmatpush1.msra.mxu0 0.0
        %1578 = vmatprep.subr.mxu0 0.0
        %1579 = vmatpush1.msra.mxu0 0.0
        %1580 = vmatprep.subr.mxu0 0.0
        %1581 = vmatpush1.msra.mxu0 0.0
        %1582 = vmatprep.subr.mxu0 0.0
        %1583 = vmatpush1.msra.mxu0 0.0
        %1584 = vmatprep.subr.mxu0 0.0
        %1585 = vmatpush1.msra.mxu0 0.0
        %1586 = vmatprep.subr.mxu0 0.0
        %1587 = vmatpush1.msra.mxu0 0.0
        %1588 = vmatprep.subr.mxu0 0.0
        %1589 = vmatpush1.msra.mxu0 0.0
        %1590 = vmatprep.subr.mxu0 0.0
        %1591 = vmatpush1.msra.mxu0 0.0
        %1592 = vmatprep.subr.mxu0 0.0
        %1593 = vmatpush1.msra.mxu0 0.0
        %1594 = vmatprep.subr.mxu0 0.0
        %1595 = vmatpush1.msra.mxu0 0.0
        %1596 = vmatprep.subr.mxu0 0.0
        %1597 = vmatpush1.msra.mxu0 0.0
        %1598 = vmatprep.subr.mxu0 0.0
        %1599 = vmatpush1.msra.mxu0 0.0
        %1600 = vmatprep.subr.mxu0 0.0
        %1601 = vmatpush1.msra.mxu0 0.0
        %1602 = vmatprep.subr.mxu0 0.0
        %1603 = vmatpush1.msra.mxu0 0.0
        %1604 = vmatprep.subr.mxu0 0.0
        %1605 = vmatpush1.msra.mxu0 0.0
        %1606 = vmatprep.subr.mxu0 0.0
        %1607 = vmatpush1.msra.mxu0 0.0
        %1608 = vmatprep.subr.mxu0 0.0
        %1609 = vmatpush1.msra.mxu0 0.0
        %1610 = vmatprep.subr.mxu0 0.0
        %1611 = vmatpush1.msra.mxu0 0.0
        %1612 = vmatprep.subr.mxu0 0.0
        %1613 = vmatpush1.msra.mxu0 0.0
        %1614 = vmatprep.subr.mxu0 0.0
        %1615 = vmatpush1.msra.mxu0 0.0
        %1616 = vmatprep.subr.mxu0 0.0
        %1617 = vmatpush1.msra.mxu0 0.0
        %1618 = vmatprep.subr.mxu0 0.0
        %1619 = vmatpush1.msra.mxu0 0.0
        %1620 = vmatprep.subr.mxu0 0.0
        %1621 = vmatpush1.msra.mxu0 0.0
        %1622 = vmatprep.subr.mxu0 0.0
        %1623 = vmatpush1.msra.mxu0 0.0
        %1624 = vmatprep.subr.mxu0 0.0
        %1625 = vmatpush1.msra.mxu0 0.0
        %1626 = vmatprep.subr.mxu0 0.0
        %1627 = vmatpush1.msra.mxu0 0.0
        %1628 = vmatprep.subr.mxu0 0.0
        %1629 = vmatpush1.msra.mxu0 0.0
        %1630 = vmatprep.subr.mxu0 0.0
        %1631 = vmatpush1.msra.mxu0 0.0
        %1632 = vmatprep.mubr.f32.mxu0 0.0
        %1633 = vmatmul.mubr.f32.gmra.mrb[0].mxu0 %v1566
        %v1634 = vpop.f32.mrb[0].mxu0
        %v1635 = vadd.f32 0.0, %v1634
        %v1636 = vpop.f32.mrb[0].mxu0
        %1637 = vdwg.mxu0
        %v1638 = vld [vmem:[%s7] sm:$0xff]
        %v1639 = vld [vmem:[%s7 + $0x8] sm:$0xff]
        %v1640 = vld [vmem:[%s7 + $0x10] sm:$0xff]
        %v1641 = vld [vmem:[%s7 + $0x18] sm:$0xff]
        %v1643 = vsel %vm794, %v1407, 0
        %1645 = vmatprep.subr.mxu0 0.0
        %1646 = vmatpush1.msra.mxu0 %v1638
        %1647 = vmatprep.subr.mxu0 0.0
        %1648 = vmatpush1.msra.mxu0 0.0
        %1649 = vmatprep.subr.mxu0 0.0
        %1650 = vmatpush1.msra.mxu0 0.0
        %1651 = vmatprep.subr.mxu0 0.0
        %1652 = vmatpush1.msra.mxu0 0.0
        %1653 = vmatprep.subr.mxu0 0.0
        %1654 = vmatpush1.msra.mxu0 0.0
        %1655 = vmatprep.subr.mxu0 0.0
        %1656 = vmatpush1.msra.mxu0 0.0
        %1657 = vmatprep.subr.mxu0 0.0
        %1658 = vmatpush1.msra.mxu0 0.0
        %1659 = vmatprep.subr.mxu0 0.0
        %1660 = vmatpush1.msra.mxu0 0.0
        %1661 = vmatprep.subr.mxu0 0.0
        %1662 = vmatpush1.msra.mxu0 0.0
        %1663 = vmatprep.subr.mxu0 0.0
        %1664 = vmatpush1.msra.mxu0 0.0
        %1665 = vmatprep.subr.mxu0 0.0
        %1666 = vmatpush1.msra.mxu0 0.0
        %1667 = vmatprep.subr.mxu0 0.0
        %1668 = vmatpush1.msra.mxu0 0.0
        %1669 = vmatprep.subr.mxu0 0.0
        %1670 = vmatpush1.msra.mxu0 0.0
        %1671 = vmatprep.subr.mxu0 0.0
        %1672 = vmatpush1.msra.mxu0 0.0
        %1673 = vmatprep.subr.mxu0 0.0
        %1674 = vmatpush1.msra.mxu0 0.0
        %1675 = vmatprep.subr.mxu0 0.0
        %1676 = vmatpush1.msra.mxu0 0.0
        %1677 = vmatprep.subr.mxu0 0.0
        %1678 = vmatpush1.msra.mxu0 0.0
        %1679 = vmatprep.subr.mxu0 0.0
        %1680 = vmatpush1.msra.mxu0 0.0
        %1681 = vmatprep.subr.mxu0 0.0
        %1682 = vmatpush1.msra.mxu0 0.0
        %1683 = vmatprep.subr.mxu0 0.0
        %1684 = vmatpush1.msra.mxu0 0.0
        %1685 = vmatprep.subr.mxu0 0.0
        %1686 = vmatpush1.msra.mxu0 0.0
        %1687 = vmatprep.subr.mxu0 0.0
        %1688 = vmatpush1.msra.mxu0 0.0
        %1689 = vmatprep.subr.mxu0 0.0
        %1690 = vmatpush1.msra.mxu0 0.0
        %1691 = vmatprep.subr.mxu0 0.0
        %1692 = vmatpush1.msra.mxu0 0.0
        %1693 = vmatprep.subr.mxu0 0.0
        %1694 = vmatpush1.msra.mxu0 0.0
        %1695 = vmatprep.subr.mxu0 0.0
        %1696 = vmatpush1.msra.mxu0 0.0
        %1697 = vmatprep.subr.mxu0 0.0
        %1698 = vmatpush1.msra.mxu0 0.0
        %1699 = vmatprep.subr.mxu0 0.0
        %1700 = vmatpush1.msra.mxu0 0.0
        %1701 = vmatprep.subr.mxu0 0.0
        %1702 = vmatpush1.msra.mxu0 0.0
        %1703 = vmatprep.subr.mxu0 0.0
        %1704 = vmatpush1.msra.mxu0 0.0
        %1705 = vmatprep.subr.mxu0 0.0
        %1706 = vmatpush1.msra.mxu0 0.0
        %1707 = vmatprep.subr.mxu0 0.0
        %1708 = vmatpush1.msra.mxu0 0.0
        %1709 = vmatprep.mubr.f32.mxu0 0.0
        %1710 = vmatmul.mubr.f32.gmra.mrb[0].mxu0 %v1643
        %v1711 = vpop.f32.mrb[0].mxu0
        %v1712 = vadd.f32 0.0, %v1711
        %v1713 = vpop.f32.mrb[0].mxu0
        %1714 = vdwg.mxu0
        %v1716 = vsel %vm794, %v1483, 0
        %1718 = vmatprep.subr.mxu0 0.0
        %1719 = vmatpush1.msra.mxu0 %v1639
        %1720 = vmatprep.subr.mxu0 0.0
        %1721 = vmatpush1.msra.mxu0 0.0
        %1722 = vmatprep.subr.mxu0 0.0
        %1723 = vmatpush1.msra.mxu0 0.0
        %1724 = vmatprep.subr.mxu0 0.0
        %1725 = vmatpush1.msra.mxu0 0.0
        %1726 = vmatprep.subr.mxu0 0.0
        %1727 = vmatpush1.msra.mxu0 0.0
        %1728 = vmatprep.subr.mxu0 0.0
        %1729 = vmatpush1.msra.mxu0 0.0
        %1730 = vmatprep.subr.mxu0 0.0
        %1731 = vmatpush1.msra.mxu0 0.0
        %1732 = vmatprep.subr.mxu0 0.0
        %1733 = vmatpush1.msra.mxu0 0.0
        %1734 = vmatprep.subr.mxu0 0.0
        %1735 = vmatpush1.msra.mxu0 0.0
        %1736 = vmatprep.subr.mxu0 0.0
        %1737 = vmatpush1.msra.mxu0 0.0
        %1738 = vmatprep.subr.mxu0 0.0
        %1739 = vmatpush1.msra.mxu0 0.0
        %1740 = vmatprep.subr.mxu0 0.0
        %1741 = vmatpush1.msra.mxu0 0.0
        %1742 = vmatprep.subr.mxu0 0.0
        %1743 = vmatpush1.msra.mxu0 0.0
        %1744 = vmatprep.subr.mxu0 0.0
        %1745 = vmatpush1.msra.mxu0 0.0
        %1746 = vmatprep.subr.mxu0 0.0
        %1747 = vmatpush1.msra.mxu0 0.0
        %1748 = vmatprep.subr.mxu0 0.0
        %1749 = vmatpush1.msra.mxu0 0.0
        %1750 = vmatprep.subr.mxu0 0.0
        %1751 = vmatpush1.msra.mxu0 0.0
        %1752 = vmatprep.subr.mxu0 0.0
        %1753 = vmatpush1.msra.mxu0 0.0
        %1754 = vmatprep.subr.mxu0 0.0
        %1755 = vmatpush1.msra.mxu0 0.0
        %1756 = vmatprep.subr.mxu0 0.0
        %1757 = vmatpush1.msra.mxu0 0.0
        %1758 = vmatprep.subr.mxu0 0.0
        %1759 = vmatpush1.msra.mxu0 0.0
        %1760 = vmatprep.subr.mxu0 0.0
        %1761 = vmatpush1.msra.mxu0 0.0
        %1762 = vmatprep.subr.mxu0 0.0
        %1763 = vmatpush1.msra.mxu0 0.0
        %1764 = vmatprep.subr.mxu0 0.0
        %1765 = vmatpush1.msra.mxu0 0.0
        %1766 = vmatprep.subr.mxu0 0.0
        %1767 = vmatpush1.msra.mxu0 0.0
        %1768 = vmatprep.subr.mxu0 0.0
        %1769 = vmatpush1.msra.mxu0 0.0
        %1770 = vmatprep.subr.mxu0 0.0
        %1771 = vmatpush1.msra.mxu0 0.0
        %1772 = vmatprep.subr.mxu0 0.0
        %1773 = vmatpush1.msra.mxu0 0.0
        %1774 = vmatprep.subr.mxu0 0.0
        %1775 = vmatpush1.msra.mxu0 0.0
        %1776 = vmatprep.subr.mxu0 0.0
        %1777 = vmatpush1.msra.mxu0 0.0
        %1778 = vmatprep.subr.mxu0 0.0
        %1779 = vmatpush1.msra.mxu0 0.0
        %1780 = vmatprep.subr.mxu0 0.0
        %1781 = vmatpush1.msra.mxu0 0.0
        %1782 = vmatprep.mubr.f32.mxu0 0.0
        %1783 = vmatmul.mubr.f32.gmra.mrb[0].mxu0 %v1716
        %v1784 = vpop.f32.mrb[0].mxu0
        %v1785 = vadd.f32 0.0, %v1784
        %v1786 = vpop.f32.mrb[0].mxu0
        %1787 = vdwg.mxu0
        %v1789 = vsel %vm794, %v1559, 0
        %1791 = vmatprep.subr.mxu0 0.0
        %1792 = vmatpush1.msra.mxu0 %v1640
        %1793 = vmatprep.subr.mxu0 0.0
        %1794 = vmatpush1.msra.mxu0 0.0
        %1795 = vmatprep.subr.mxu0 0.0
        %1796 = vmatpush1.msra.mxu0 0.0
        %1797 = vmatprep.subr.mxu0 0.0
        %1798 = vmatpush1.msra.mxu0 0.0
        %1799 = vmatprep.subr.mxu0 0.0
        %1800 = vmatpush1.msra.mxu0 0.0
        %1801 = vmatprep.subr.mxu0 0.0
        %1802 = vmatpush1.msra.mxu0 0.0
        %1803 = vmatprep.subr.mxu0 0.0
        %1804 = vmatpush1.msra.mxu0 0.0
        %1805 = vmatprep.subr.mxu0 0.0
        %1806 = vmatpush1.msra.mxu0 0.0
        %1807 = vmatprep.subr.mxu0 0.0
        %1808 = vmatpush1.msra.mxu0 0.0
        %1809 = vmatprep.subr.mxu0 0.0
        %1810 = vmatpush1.msra.mxu0 0.0
        %1811 = vmatprep.subr.mxu0 0.0
        %1812 = vmatpush1.msra.mxu0 0.0
        %1813 = vmatprep.subr.mxu0 0.0
        %1814 = vmatpush1.msra.mxu0 0.0
        %1815 = vmatprep.subr.mxu0 0.0
        %1816 = vmatpush1.msra.mxu0 0.0
        %1817 = vmatprep.subr.mxu0 0.0
        %1818 = vmatpush1.msra.mxu0 0.0
        %1819 = vmatprep.subr.mxu0 0.0
        %1820 = vmatpush1.msra.mxu0 0.0
        %1821 = vmatprep.subr.mxu0 0.0
        %1822 = vmatpush1.msra.mxu0 0.0
        %1823 = vmatprep.subr.mxu0 0.0
        %1824 = vmatpush1.msra.mxu0 0.0
        %1825 = vmatprep.subr.mxu0 0.0
        %1826 = vmatpush1.msra.mxu0 0.0
        %1827 = vmatprep.subr.mxu0 0.0
        %1828 = vmatpush1.msra.mxu0 0.0
        %1829 = vmatprep.subr.mxu0 0.0
        %1830 = vmatpush1.msra.mxu0 0.0
        %1831 = vmatprep.subr.mxu0 0.0
        %1832 = vmatpush1.msra.mxu0 0.0
        %1833 = vmatprep.subr.mxu0 0.0
        %1834 = vmatpush1.msra.mxu0 0.0
        %1835 = vmatprep.subr.mxu0 0.0
        %1836 = vmatpush1.msra.mxu0 0.0
        %1837 = vmatprep.subr.mxu0 0.0
        %1838 = vmatpush1.msra.mxu0 0.0
        %1839 = vmatprep.subr.mxu0 0.0
        %1840 = vmatpush1.msra.mxu0 0.0
        %1841 = vmatprep.subr.mxu0 0.0
        %1842 = vmatpush1.msra.mxu0 0.0
        %1843 = vmatprep.subr.mxu0 0.0
        %1844 = vmatpush1.msra.mxu0 0.0
        %1845 = vmatprep.subr.mxu0 0.0
        %1846 = vmatpush1.msra.mxu0 0.0
        %1847 = vmatprep.subr.mxu0 0.0
        %1848 = vmatpush1.msra.mxu0 0.0
        %1849 = vmatprep.subr.mxu0 0.0
        %1850 = vmatpush1.msra.mxu0 0.0
        %1851 = vmatprep.subr.mxu0 0.0
        %1852 = vmatpush1.msra.mxu0 0.0
        %1853 = vmatprep.subr.mxu0 0.0
        %1854 = vmatpush1.msra.mxu0 0.0
        %1855 = vmatprep.mubr.f32.mxu0 0.0
        %1856 = vmatmul.mubr.f32.gmra.mrb[0].mxu0 %v1789
        %v1857 = vpop.f32.mrb[0].mxu0
        %v1858 = vadd.f32 0.0, %v1857
        %v1859 = vpop.f32.mrb[0].mxu0
        %1860 = vdwg.mxu0
        %v1862 = vsel %vm794, %v1635, 0
        %1864 = vmatprep.subr.mxu0 0.0
        %1865 = vmatpush1.msra.mxu0 %v1641
        %1866 = vmatprep.subr.mxu0 0.0
        %1867 = vmatpush1.msra.mxu0 0.0
        %1868 = vmatprep.subr.mxu0 0.0
        %1869 = vmatpush1.msra.mxu0 0.0
        %1870 = vmatprep.subr.mxu0 0.0
        %1871 = vmatpush1.msra.mxu0 0.0
        %1872 = vmatprep.subr.mxu0 0.0
        %1873 = vmatpush1.msra.mxu0 0.0
        %1874 = vmatprep.subr.mxu0 0.0
        %1875 = vmatpush1.msra.mxu0 0.0
        %1876 = vmatprep.subr.mxu0 0.0
        %1877 = vmatpush1.msra.mxu0 0.0
        %1878 = vmatprep.subr.mxu0 0.0
        %1879 = vmatpush1.msra.mxu0 0.0
        %1880 = vmatprep.subr.mxu0 0.0
        %1881 = vmatpush1.msra.mxu0 0.0
        %1882 = vmatprep.subr.mxu0 0.0
        %1883 = vmatpush1.msra.mxu0 0.0
        %1884 = vmatprep.subr.mxu0 0.0
        %1885 = vmatpush1.msra.mxu0 0.0
        %1886 = vmatprep.subr.mxu0 0.0
        %1887 = vmatpush1.msra.mxu0 0.0
        %1888 = vmatprep.subr.mxu0 0.0
        %1889 = vmatpush1.msra.mxu0 0.0
        %1890 = vmatprep.subr.mxu0 0.0
        %1891 = vmatpush1.msra.mxu0 0.0
        %1892 = vmatprep.subr.mxu0 0.0
        %1893 = vmatpush1.msra.mxu0 0.0
        %1894 = vmatprep.subr.mxu0 0.0
        %1895 = vmatpush1.msra.mxu0 0.0
        %1896 = vmatprep.subr.mxu0 0.0
        %1897 = vmatpush1.msra.mxu0 0.0
        %1898 = vmatprep.subr.mxu0 0.0
        %1899 = vmatpush1.msra.mxu0 0.0
        %1900 = vmatprep.subr.mxu0 0.0
        %1901 = vmatpush1.msra.mxu0 0.0
        %1902 = vmatprep.subr.mxu0 0.0
        %1903 = vmatpush1.msra.mxu0 0.0
        %1904 = vmatprep.subr.mxu0 0.0
        %1905 = vmatpush1.msra.mxu0 0.0
        %1906 = vmatprep.subr.mxu0 0.0
        %1907 = vmatpush1.msra.mxu0 0.0
        %1908 = vmatprep.subr.mxu0 0.0
        %1909 = vmatpush1.msra.mxu0 0.0
        %1910 = vmatprep.subr.mxu0 0.0
        %1911 = vmatpush1.msra.mxu0 0.0
        %1912 = vmatprep.subr.mxu0 0.0
        %1913 = vmatpush1.msra.mxu0 0.0
        %1914 = vmatprep.subr.mxu0 0.0
        %1915 = vmatpush1.msra.mxu0 0.0
        %1916 = vmatprep.subr.mxu0 0.0
        %1917 = vmatpush1.msra.mxu0 0.0
        %1918 = vmatprep.subr.mxu0 0.0
        %1919 = vmatpush1.msra.mxu0 0.0
        %1920 = vmatprep.subr.mxu0 0.0
        %1921 = vmatpush1.msra.mxu0 0.0
        %1922 = vmatprep.subr.mxu0 0.0
        %1923 = vmatpush1.msra.mxu0 0.0
        %1924 = vmatprep.subr.mxu0 0.0
        %1925 = vmatpush1.msra.mxu0 0.0
        %1926 = vmatprep.subr.mxu0 0.0
        %1927 = vmatpush1.msra.mxu0 0.0
        %1928 = vmatprep.mubr.f32.mxu0 0.0
        %1929 = vmatmul.mubr.f32.gmra.mrb[0].mxu0 %v1862
        %v1930 = vpop.f32.mrb[0].mxu0
        %v1931 = vadd.f32 0.0, %v1930
        %v1932 = vpop.f32.mrb[0].mxu0
        %1933 = vdwg.mxu0
        %v1934 = vsel %vm508, %v1712, 0.0
        %v1935 = vsel %vm508, %v1785, 0.0
        %v1936 = vadd.f32 %v1934, %v1935
        %v1937 = vsel %vm508, %v1858, 0.0
        %v1938 = vadd.f32 %v1936, %v1937
        %v1939 = vsel %vm508, %v1931, 0.0
        %v1940 = vadd.f32 %v1938, %v1939
        %v1941 = vadd.f32 %v463, %v1940
        %v1942 = vld [vmem:[%s8] sm:$0x1]
        %v1943 = vld [vmem:[%s9] sm:$0x1]
        %v1944 = vsel %vm508, %v1941, 0.0
        %1945 = vadd.xlane.f32.xlu0 %v1944
        %v1946 = vpop.xlane.xlu0 %1945
        %v1947 = vrcp.pop 32.0
        %v1948 = vmul.f32 %v1946, %v1947
        %v1949 = vsub.f32 %v1941, %v1948
        %v1950 = vmul.f32 %v1949, %v1949
        %v1951 = vsel %vm508, %v1950, 0.0
        %1952 = vadd.xlane.f32.xlu0 %v1951
        %v1953 = vpop.xlane.xlu0 %1952
        %v1954 = vmul.f32 %v1953, %v1947
        %v1955 = vadd.f32 %v1954, 1e-05
        %v1956 = vrsqrt.pop %v1955
        %v1957 = vmul.f32 %v1949, %v1956
        %v1959 = vlaneseq
        %v1960 = vshrl.u32 %v1959, 7
        %v1961 = vsub.s32 0, %v1960
        %v1962 = vrot.slane %v1942, %v1961
        %v1964 = vmul.f32 %v1957, %v1962
        %v1966 = vlaneseq
        %v1967 = vshrl.u32 %v1966, 7
        %v1968 = vsub.s32 0, %v1967
        %v1969 = vrot.slane %v1943, %v1968
        %v1971 = vadd.f32 %v1964, %v1969
        %v1972 = vld [vmem:[%s10] sm:$0xff]
        %v1973 = vld [vmem:[%s10 + $0x8] sm:$0xff]
        %v1974 = vld [vmem:[%s10 + $0x10] sm:$0xff]
        %v1975 = vld [vmem:[%s10 + $0x18] sm:$0xff]
        %v1976 = vld [vmem:[%s11] sm:$0x1]
        %v1978 = vlaneseq
        %v1979 = vshrl.u32 %v1978, 7
        %v1980 = vsub.s32 0, %v1979
        %v1981 = vrot.slane %v1976, %v1980
        %v1984 = vsel %vm508, %v1971, 0
        %1986 = vmatprep.subr.mxu0 0.0
        %1987 = vmatpush1.msra.mxu0 %v1972
        %1988 = vmatprep.subr.mxu0 0.0
        %1989 = vmatpush1.msra.mxu0 %v1973
        %1990 = vmatprep.subr.mxu0 0.0
        %1991 = vmatpush1.msra.mxu0 %v1974
        %1992 = vmatprep.subr.mxu0 0.0
        %1993 = vmatpush1.msra.mxu0 %v1975
        %1994 = vmatprep.subr.mxu0 0.0
        %1995 = vmatpush1.msra.mxu0 0.0
        %1996 = vmatprep.subr.mxu0 0.0
        %1997 = vmatpush1.msra.mxu0 0.0
        %1998 = vmatprep.subr.mxu0 0.0
        %1999 = vmatpush1.msra.mxu0 0.0
        %2000 = vmatprep.subr.mxu0 0.0
        %2001 = vmatpush1.msra.mxu0 0.0
        %2002 = vmatprep.subr.mxu0 0.0
        %2003 = vmatpush1.msra.mxu0 0.0
        %2004 = vmatprep.subr.mxu0 0.0
        %2005 = vmatpush1.msra.mxu0 0.0
        %2006 = vmatprep.subr.mxu0 0.0
        %2007 = vmatpush1.msra.mxu0 0.0
        %2008 = vmatprep.subr.mxu0 0.0
        %2009 = vmatpush1.msra.mxu0 0.0
        %2010 = vmatprep.subr.mxu0 0.0
        %2011 = vmatpush1.msra.mxu0 0.0
        %2012 = vmatprep.subr.mxu0 0.0
        %2013 = vmatpush1.msra.mxu0 0.0
        %2014 = vmatprep.subr.mxu0 0.0
        %2015 = vmatpush1.msra.mxu0 0.0
        %2016 = vmatprep.subr.mxu0 0.0
        %2017 = vmatpush1.msra.mxu0 0.0
        %2018 = vmatprep.subr.mxu0 0.0
        %2019 = vmatpush1.msra.mxu0 0.0
        %2020 = vmatprep.subr.mxu0 0.0
        %2021 = vmatpush1.msra.mxu0 0.0
        %2022 = vmatprep.subr.mxu0 0.0
        %2023 = vmatpush1.msra.mxu0 0.0
        %2024 = vmatprep.subr.mxu0 0.0
        %2025 = vmatpush1.msra.mxu0 0.0
        %2026 = vmatprep.subr.mxu0 0.0
        %2027 = vmatpush1.msra.mxu0 0.0
        %2028 = vmatprep.subr.mxu0 0.0
        %2029 = vmatpush1.msra.mxu0 0.0
        %2030 = vmatprep.subr.mxu0 0.0
        %2031 = vmatpush1.msra.mxu0 0.0
        %2032 = vmatprep.subr.mxu0 0.0
        %2033 = vmatpush1.msra.mxu0 0.0
        %2034 = vmatprep.subr.mxu0 0.0
        %2035 = vmatpush1.msra.mxu0 0.0
        %2036 = vmatprep.subr.mxu0 0.0
        %2037 = vmatpush1.msra.mxu0 0.0
        %2038 = vmatprep.subr.mxu0 0.0
        %2039 = vmatpush1.msra.mxu0 0.0
        %2040 = vmatprep.subr.mxu0 0.0
        %2041 = vmatpush1.msra.mxu0 0.0
        %2042 = vmatprep.subr.mxu0 0.0
        %2043 = vmatpush1.msra.mxu0 0.0
        %2044 = vmatprep.subr.mxu0 0.0
        %2045 = vmatpush1.msra.mxu0 0.0
        %2046 = vmatprep.subr.mxu0 0.0
        %2047 = vmatpush1.msra.mxu0 0.0
        %2048 = vmatprep.subr.mxu0 0.0
        %2049 = vmatpush1.msra.mxu0 0.0
        %2050 = vmatprep.mubr.f32.mxu0 0.0
        %2051 = vmatmul.mubr.f32.gmra.mrb[0].mxu0 %v1984
        %v2052 = vpop.f32.mrb[0].mxu0
        %v2053 = vadd.f32 %v1981, %v2052
        %v2054 = vpop.f32.mrb[0].mxu0
        %2055 = vdwg.mxu0
        %v2056 = vmul.f32 %v2053, 0.5
        %v2057 = vmul.f32 %v2053, 0.70710677
        %v2058 = verf.f32.pop %v2057
        %v2059 = vadd.f32 %v2058, 1.0
        %v2060 = vmul.f32 %v2056, %v2059
        %v2061 = vld [vmem:[%s12] sm:$0xff]
        %v2062 = vld [vmem:[%s12 + $0x8] sm:$0xff]
        %v2063 = vld [vmem:[%s12 + $0x10] sm:$0xff]
        %v2064 = vld [vmem:[%s12 + $0x18] sm:$0xff]
        %v2065 = vld [vmem:[%s12 + $0x20] sm:$0xff]
        %v2066 = vld [vmem:[%s12 + $0x28] sm:$0xff]
        %v2067 = vld [vmem:[%s12 + $0x30] sm:$0xff]
        %v2068 = vld [vmem:[%s12 + $0x38] sm:$0xff]
        %v2069 = vld [vmem:[%s13] sm:$0x1]
        %v2071 = vlaneseq
        %v2072 = vshrl.u32 %v2071, 7
        %v2073 = vsub.s32 0, %v2072
        %v2074 = vrot.slane %v2069, %v2073
        %vm2076 = vcmask 523264
        %v2078 = vsel %vm2076, %v2060, 0
        %2080 = vmatprep.subr.mxu0 0.0
        %2081 = vmatpush1.msra.mxu0 %v2061
        %2082 = vmatprep.subr.mxu0 0.0
        %2083 = vmatpush1.msra.mxu0 %v2062
        %2084 = vmatprep.subr.mxu0 0.0
        %2085 = vmatpush1.msra.mxu0 %v2063
        %2086 = vmatprep.subr.mxu0 0.0
        %2087 = vmatpush1.msra.mxu0 %v2064
        %2088 = vmatprep.subr.mxu0 0.0
        %2089 = vmatpush1.msra.mxu0 %v2065
        %2090 = vmatprep.subr.mxu0 0.0
        %2091 = vmatpush1.msra.mxu0 %v2066
        %2092 = vmatprep.subr.mxu0 0.0
        %2093 = vmatpush1.msra.mxu0 %v2067
        %2094 = vmatprep.subr.mxu0 0.0
        %2095 = vmatpush1.msra.mxu0 %v2068
        %2096 = vmatprep.subr.mxu0 0.0
        %2097 = vmatpush1.msra.mxu0 0.0
        %2098 = vmatprep.subr.mxu0 0.0
        %2099 = vmatpush1.msra.mxu0 0.0
        %2100 = vmatprep.subr.mxu0 0.0
        %2101 = vmatpush1.msra.mxu0 0.0
        %2102 = vmatprep.subr.mxu0 0.0
        %2103 = vmatpush1.msra.mxu0 0.0
        %2104 = vmatprep.subr.mxu0 0.0
        %2105 = vmatpush1.msra.mxu0 0.0
        %2106 = vmatprep.subr.mxu0 0.0
        %2107 = vmatpush1.msra.mxu0 0.0
        %2108 = vmatprep.subr.mxu0 0.0
        %2109 = vmatpush1.msra.mxu0 0.0
        %2110 = vmatprep.subr.mxu0 0.0
        %2111 = vmatpush1.msra.mxu0 0.0
        %2112 = vmatprep.subr.mxu0 0.0
        %2113 = vmatpush1.msra.mxu0 0.0
        %2114 = vmatprep.subr.mxu0 0.0
        %2115 = vmatpush1.msra.mxu0 0.0
        %2116 = vmatprep.subr.mxu0 0.0
        %2117 = vmatpush1.msra.mxu0 0.0
        %2118 = vmatprep.subr.mxu0 0.0
        %2119 = vmatpush1.msra.mxu0 0.0
        %2120 = vmatprep.subr.mxu0 0.0
        %2121 = vmatpush1.msra.mxu0 0.0
        %2122 = vmatprep.subr.mxu0 0.0
        %2123 = vmatpush1.msra.mxu0 0.0
        %2124 = vmatprep.subr.mxu0 0.0
        %2125 = vmatpush1.msra.mxu0 0.0
        %2126 = vmatprep.subr.mxu0 0.0
        %2127 = vmatpush1.msra.mxu0 0.0
        %2128 = vmatprep.subr.mxu0 0.0
        %2129 = vmatpush1.msra.mxu0 0.0
        %2130 = vmatprep.subr.mxu0 0.0
        %2131 = vmatpush1.msra.mxu0 0.0
        %2132 = vmatprep.subr.mxu0 0.0
        %2133 = vmatpush1.msra.mxu0 0.0
        %2134 = vmatprep.subr.mxu0 0.0
        %2135 = vmatpush1.msra.mxu0 0.0
        %2136 = vmatprep.subr.mxu0 0.0
        %2137 = vmatpush1.msra.mxu0 0.0
        %2138 = vmatprep.subr.mxu0 0.0
        %2139 = vmatpush1.msra.mxu0 0.0
        %2140 = vmatprep.subr.mxu0 0.0
        %2141 = vmatpush1.msra.mxu0 0.0
        %2142 = vmatprep.subr.mxu0 0.0
        %2143 = vmatpush1.msra.mxu0 0.0
        %2144 = vmatprep.mubr.f32.mxu0 0.0
        %2145 = vmatmul.mubr.f32.gmra.mrb[0].mxu0 %v2078
        %v2146 = vpop.f32.mrb[0].mxu0
        %v2147 = vadd.f32 %v2074, %v2146
        %v2148 = vpop.f32.mrb[0].mxu0
        %2149 = vdwg.mxu0
        %v2150 = vadd.f32 %v1941, %v2147
        %2151 = vst.msk [vmem:[%s458] sm:$0xff] %vm508, %v2150
        %s2152 = sand.u32 %s335, 1
        %s2153 = scalar_lea.sflag [#allocation3], %s2152
        %s2154 = sand.u32 %s335, 1
        %s2155 = smul.addr %s2154, 8
        %s2156 = scalar_lea.vmem [#allocation2], %s2155
        // Predicated region
        $region77: #{tpu_custom_call.1} parent=75 // pred_check
          %p2157 = pneg %p345
        $region78: #{tpu_custom_call.1} parent=75 // pred_check_branch
          %2159 = sbr.rel (%p2157) target = $region80
        $region79: #{tpu_custom_call.1} parent=75 // pred_region
          %s2161 = ssub.s32 128, 128
          %2162 = vsyncadd %s2153, %s2161
          %s2163 = smul.addr %s28, 128
          %s2164 = scalar_lea.hbm %s14, %s2163
          %s2166 = sshll.u32 %s2156, 4
          %s2167 = int_to_ptr.vmem [resolvable:$true] %s2166
          %2169 = dma.vmem_to_hbm [thread:$0]  %s2167, 128, %s2164, %s2153
        $region80: #{tpu_custom_call.1} parent=75 // pred_fallthru
          _
      $region76: #{tpu_custom_call.1} parent=5 // pred_fallthru
        _
      %p2170 = scmp.le.s32.totalorder 2, %s23
      // Predicated region
      $region81: #{tpu_custom_call.1} parent=5 // pred_check
        %p2171 = pneg %p2170
      $region82: #{tpu_custom_call.1} parent=5 // pred_check_branch
        %2173 = sbr.rel (%p2171) target = $region84
      $region83: #{tpu_custom_call.1} parent=5 // pred_region
        %s2174 = ssub.s32 %s23, 2
        // Predicated region
        $region85: #{tpu_custom_call.1} parent=83 // pred_check
          %p2175 = pneg %p351
        $region86: #{tpu_custom_call.1} parent=83 // pred_check_branch
          %2177 = sbr.rel (%p2175) target = $region88
        $region87: #{tpu_custom_call.1} parent=83 // pred_region
          %s2178 = sand.u32 %s336, 1
          %s2179 = scalar_lea.sflag [#allocation3], %s2178
          %s2180 = sand.u32 %s336, 1
          %s2181 = smul.addr %s2180, 8
          %s2182 = scalar_lea.vmem [#allocation2], %s2181
          %2183 = dma.done %s2179, 128
        $region88: #{tpu_custom_call.1} parent=83 // pred_fallthru
          _
      $region84: #{tpu_custom_call.1} parent=5 // pred_fallthru
        _
    $region6: #{tpu_custom_call.1} parent=1 // loop_footer
      %s27 = sadd.s32 1, %s23
    $region7: #{tpu_custom_call.1} parent=1 // loop_footer_branch
      %22 = sbr.rel target = $region3
    $region8: #{tpu_custom_call.1} parent=1 // loop_exit
      _
    %2184 = vsyncpa [#allocation3], 1
    %s2185 = scalar_lea.sflag [#allocation3], 1
    %2186 = vsyncpa %s2185, 1

</llo_original>
